<compile_context>
chip_gen: v6e
topology: v6e:2x2x1
jax: 0.10.0
libtpu: 0.0.40
codegen_flags: <defaults>
</compile_context>

<pallas_src>
import functools

import numpy as np
import jax
import jax.numpy as jnp
from jax import lax
from jax.experimental import pallas as pl
from jax.experimental.pallas import tpu as pltpu

# Problem constants (from the PyTorch module)
IN_CHANNELS = 3
OUT_CHANNELS = 16
KSIZE = 3
STRIDE = 2
PADDING = 1
OUTPUT_PADDING = 1
CPAD = 8                      # contraction depth (Cin=3, +1 ones row, +4 zero pad)


def _fused_kernel(x8_ref, wb_ref, ww_ref, wh_ref, whw_ref, ab_ref, o_ref,
                  *, H, W, Cout):
    """Single grid step.  Whole problem lives in VMEM.

    x8_ref : (B, 8, H*W)     rows 0..2 = input channels (flattened h*W+w),
                             row 3 = 1.0 (bias row), rows 4..7 = 0
    wb_ref : (4*Cout, 8)     per-phase weights, base tap   (col 3 = conv bias)
    ww_ref : (4*Cout, 8)     per-phase weights, w+1 tap
    wh_ref : (4*Cout, 8)     per-phase weights, h+1 tap
    whw_ref: (4*Cout, 8)     per-phase weights, h+1,w+1 tap
    ab_ref : (Cout, 1)       additive bias
    o_ref  : (B, Cout, 2*W)
    """
    f32 = jnp.float32
    S = H * W
    OW = 2 * W

    # ---- structural matrices, generated on-chip (no HBM operands) ----------
    # shift matrices: xs = x @ sh  gives  xs[:, j] = x[:, j+shift] with the
    # out-of-range taps zeroed (also realizes the conv boundary conditions).
    i_idx = lax.broadcasted_iota(jnp.int32, (S, S), 0)          # source index
    j_idx = lax.broadcasted_iota(jnp.int32, (S, S), 1)          # dest index
    w_of_j = jnp.bitwise_and(j_idx, W - 1)                      # W is a pow2
    sh_w = jnp.where((i_idx == j_idx + 1) & (w_of_j != W - 1), f32(1.0), f32(0.0))
    sh_h = jnp.where((i_idx == j_idx + W) & (j_idx < (H - 1) * W), f32(1.0), f32(0.0))

    # height-sum + even/odd output-column placement matrices:
    #   t_e[s, ow] = 1 iff ow == 2*(s mod W)    (even output columns)
    #   t_o[s, ow] = 1 iff ow == 2*(s mod W)+1  (odd output columns)
    s_idx = lax.broadcasted_iota(jnp.int32, (S, OW), 0)
    ow_idx = lax.broadcasted_iota(jnp.int32, (S, OW), 1)
    n2 = 2 * jnp.bitwise_and(s_idx, W - 1)
    t_e = jnp.where(ow_idx == n2, f32(1.0), f32(0.0))
    t_o = jnp.where(ow_idx == n2 + 1, f32(1.0), f32(0.0))

    wb = wb_ref[...]
    ww = ww_ref[...]
    wh = wh_ref[...]
    whw = whw_ref[...]
    ab = ab_ref[...]

    B = x8_ref.shape[0]
    for b in range(B):                                   # static, B == 2
        xb = x8_ref[b]                                   # (8, S)

        # shifted input taps (odd-phase contributions)
        xw = jnp.dot(xb, sh_w, preferred_element_type=f32)     # x[h, w+1]
        xh = jnp.dot(xb, sh_h, preferred_element_type=f32)     # x[h+1, w]
        xhw = jnp.dot(xh, sh_w, preferred_element_type=f32)    # x[h+1, w+1]

        # conv_transpose via phase decomposition: row p*Cout+c of y is the
        # conv output channel c at output phase p = 2*(oh%2) + (ow%2), laid
        # out over the (h, w) base grid along the lane axis.  Conv bias is
        # folded in through the constant-one row of xb (column 3 of wb).
        y = (jnp.dot(wb, xb, preferred_element_type=f32)
             + jnp.dot(ww, xw, preferred_element_type=f32)
             + jnp.dot(wh, xh, preferred_element_type=f32)
             + jnp.dot(whw, xhw, preferred_element_type=f32))  # (4*Cout, S)

        # channel-min per phase (sublane reductions over vreg-aligned slices)
        m0 = jnp.min(y[0 * Cout:1 * Cout], axis=0, keepdims=True)   # (oh ev, ow ev)
        m1 = jnp.min(y[1 * Cout:2 * Cout], axis=0, keepdims=True)   # (oh ev, ow od)
        m2 = jnp.min(y[2 * Cout:3 * Cout], axis=0, keepdims=True)   # (oh od, ow ev)
        m3 = jnp.min(y[3 * Cout:4 * Cout], axis=0, keepdims=True)   # (oh od, ow od)

        # height-sum (over both oh phases and all base rows) + interleave the
        # even/odd output columns, in two tiny matmuls.
        s = (jnp.dot(m0 + m2, t_e, preferred_element_type=f32)
             + jnp.dot(m1 + m3, t_o, preferred_element_type=f32))   # (1, OW)

        # exact GELU: 0.5*x*(1+erf(x/sqrt(2))); erf via Abramowitz–Stegun
        # 7.1.26 (|abs err| <= 1.5e-7), built only from mul/add/exp/where.
        z = s * f32(0.7071067811865476)
        az = jnp.abs(z)
        t = 1.0 / (1.0 + f32(0.3275911) * az)
        poly = t * (f32(0.254829592)
               + t * (f32(-0.284496736)
               + t * (f32(1.421413741)
               + t * (f32(-1.453152027)
               + t * f32(1.061405429)))))
        erf_abs = 1.0 - poly * jnp.exp(-az * az)
        erf_z = jnp.where(z >= 0, erf_abs, -erf_abs)
        g = f32(0.5) * s * (1.0 + erf_z)                  # (1, OW)

        o_ref[b] = ab + g                                 # (Cout,1)+(1,OW)->(Cout,OW)


def prepare_params(conv_w, conv_b, add_b):
    """Host-side, run ONCE (hoisted out of the per-call jit path).

    conv_w: (Cin, Cout, K, K) ConvTranspose2d weight; conv_b: (Cout,);
    add_b: (Cout, 1, 1).  Builds the per-phase tap weight matrices for the
    stride-2 phase decomposition of the transposed conv.
    """
    w = np.asarray(jax.device_get(conv_w), np.float32)
    cb = np.asarray(jax.device_get(conv_b), np.float32)
    ab = np.asarray(jax.device_get(add_b), np.float32)
    Cin, Cout, K, _ = w.shape
    assert (K, STRIDE, PADDING, OUTPUT_PADDING) == (3, 2, 1, 1)
    assert Cin + 1 <= CPAD

    wb = np.zeros((4 * Cout, CPAD), np.float32)    # base tap  (ih=m,   iw=n)
    ww = np.zeros((4 * Cout, CPAD), np.float32)    # w+1 tap   (ih=m,   iw=n+1)
    wh = np.zeros((4 * Cout, CPAD), np.float32)    # h+1 tap   (ih=m+1, iw=n)
    whw = np.zeros((4 * Cout, CPAD), np.float32)   # h+1,w+1 tap
    for p in range(4):
        ph, qw = divmod(p, 2)                      # output phase (oh%2, ow%2)
        rows = slice(p * Cout, (p + 1) * Cout)
        wb[rows, :Cin] = w[:, :, ph + 1, qw + 1].T       # kh=ph+1, kw=qw+1
        wb[rows, Cin] = cb                               # bias via ones row
        if qw == 1:
            ww[rows, :Cin] = w[:, :, ph + 1, 0].T        # kw=0
        if ph == 1:
            wh[rows, :Cin] = w[:, :, 0, qw + 1].T        # kh=0
        if ph == 1 and qw == 1:
            whw[rows, :Cin] = w[:, :, 0, 0].T            # kh=0, kw=0

    return (jnp.asarray(wb), jnp.asarray(ww), jnp.asarray(wh), jnp.asarray(whw),
            jnp.asarray(ab.reshape(Cout, 1)))


def model_forward(x, wb, ww, wh, whw, ab):
    """x: (B, Cin, H, W) NCHW.  Returns (B, Cout, 1, 2*W) NCHW, float32."""
    B, Cin, H, W = x.shape
    assert W & (W - 1) == 0 and Cin + 1 <= CPAD
    S = H * W
    Cout = ab.shape[0]
    OW = 2 * W

    # Only wrapper data op: flatten and append the constant-one (bias) row and
    # zero pad rows -> (B, 8, S), ~16 KiB total.
    x_flat = x.reshape(B, Cin, S).astype(jnp.float32)
    x8 = jnp.concatenate(
        [x_flat,
         jnp.ones((B, 1, S), jnp.float32),
         jnp.zeros((B, CPAD - Cin - 1, S), jnp.float32)], axis=1)

    kern = functools.partial(_fused_kernel, H=H, W=W, Cout=Cout)
    out = pl.pallas_call(
        kern,
        out_shape=jax.ShapeDtypeStruct((B, Cout, OW), jnp.float32),
        grid_spec=pltpu.PrefetchScalarGridSpec(
            num_scalar_prefetch=0,
            grid=(1,),                                    # single step, one TC
            in_specs=[
                pl.BlockSpec((B, CPAD, S), lambda i: (0, 0, 0)),
                pl.BlockSpec((4 * Cout, CPAD), lambda i: (0, 0)),
                pl.BlockSpec((4 * Cout, CPAD), lambda i: (0, 0)),
                pl.BlockSpec((4 * Cout, CPAD), lambda i: (0, 0)),
                pl.BlockSpec((4 * Cout, CPAD), lambda i: (0, 0)),
                pl.BlockSpec((Cout, 1), lambda i: (0, 0)),
            ],
            out_specs=pl.BlockSpec((B, Cout, OW), lambda i: (0, 0, 0)),
        ),
        compiler_params=pltpu.CompilerParams(
            dimension_semantics=("arbitrary",)),
    )(x8, wb, ww, wh, whw, ab)
    return out.reshape(B, Cout, 1, OW)


def reference_forward(x, conv_w, conv_b, add_b):
    """Pure-JAX reference matching F.conv_transpose2d / min / sum / gelu / add."""
    pad_lo = KSIZE - 1 - PADDING
    pad_hi = KSIZE - 1 - PADDING + OUTPUT_PADDING
    w_oihw = jnp.transpose(conv_w[:, :, ::-1, ::-1], (1, 0, 2, 3))
    y = lax.conv_general_dilated(
        x, w_oihw, window_strides=(1, 1),
        padding=((pad_lo, pad_hi), (pad_lo, pad_hi)),
        lhs_dilation=(STRIDE, STRIDE), rhs_dilation=(1, 1),
        dimension_numbers=("NCHW", "OIHW", "NCHW"))
    y = y + conv_b[None, :, None, None]
    m = jnp.min(y, axis=1, keepdims=True)
    s = jnp.sum(m, axis=2, keepdims=True)
    g = jax.nn.gelu(s, approximate=False)
    return g + add_b[None]


if __name__ == "__main__":
    key = jax.random.PRNGKey(0)
    k1, k2, k3, k4 = jax.random.split(key, 4)

    B, H, W = 2, 16, 16
    x = jax.random.normal(k1, (B, IN_CHANNELS, H, W), jnp.float32)
    # ConvTranspose2d weight shape: (in_channels, out_channels, kH, kW)
    conv_w = 0.1 * jax.random.normal(k2, (IN_CHANNELS, OUT_CHANNELS, KSIZE, KSIZE),
                                     jnp.float32)
    conv_b = 0.1 * jax.random.normal(k3, (OUT_CHANNELS,), jnp.float32)
    add_b = 0.02 * jax.random.normal(k4, (OUT_CHANNELS, 1, 1), jnp.float32)

    params = prepare_params(conv_w, conv_b, add_b)        # once, outside jit
    fwd = jax.jit(model_forward)
    out = jax.block_until_ready(fwd(x, *params))

    ref = reference_forward(x, conv_w, conv_b, add_b)
    assert out.shape == (B, OUT_CHANNELS, 1, 2 * W), out.shape
    max_err = float(np.max(np.abs(np.asarray(out) - np.asarray(ref))))
    assert np.allclose(np.asarray(out), np.asarray(ref), rtol=2e-4, atol=2e-4), max_err

    print("KERNEL_OK")
</pallas_src>

<mosaic_0001>
module attributes {stable_mosaic.version = 11 : i64} {
  func.func @_fused_kernel(%arg0: i32, %arg1: memref<2x8x256xf32, #tpu.memory_space<vmem>>, %arg2: memref<64x8xf32, #tpu.memory_space<vmem>>, %arg3: memref<64x8xf32, #tpu.memory_space<vmem>>, %arg4: memref<64x8xf32, #tpu.memory_space<vmem>>, %arg5: memref<64x8xf32, #tpu.memory_space<vmem>>, %arg6: memref<16x1xf32, #tpu.memory_space<vmem>>, %arg7: memref<2x16x32xf32, #tpu.memory_space<vmem>>) attributes {dimension_semantics = [#tpu.dimension_semantics<arbitrary>], iteration_bounds = array<i64: 1>, scalar_prefetch = 0 : i64, scratch_operands = 0 : i64, tpu.core_type = #tpu.core_type<tc>, window_params = [{pipeline_mode = #tpu.pipeline_mode<synchronous>, transform_indices = @transform_0, window_bounds = array<i64: 2, 8, 256>}, {pipeline_mode = #tpu.pipeline_mode<synchronous>, transform_indices = @transform_1, window_bounds = array<i64: 64, 8>}, {pipeline_mode = #tpu.pipeline_mode<synchronous>, transform_indices = @transform_2, window_bounds = array<i64: 64, 8>}, {pipeline_mode = #tpu.pipeline_mode<synchronous>, transform_indices = @transform_3, window_bounds = array<i64: 64, 8>}, {pipeline_mode = #tpu.pipeline_mode<synchronous>, transform_indices = @transform_4, window_bounds = array<i64: 64, 8>}, {pipeline_mode = #tpu.pipeline_mode<synchronous>, transform_indices = @transform_5, window_bounds = array<i64: 16, 1>}, {pipeline_mode = #tpu.pipeline_mode<synchronous>, transform_indices = @transform_6, window_bounds = array<i64: 2, 16, 32>}]} {
    %0 = tpu.iota {dimensions = array<i32: 0>} : vector<256x256xi32>
    %1 = tpu.iota {dimensions = array<i32: 1>} : vector<256x256xi32>
    %c15_i32 = arith.constant 15 : i32
    %2 = vector.broadcast %c15_i32 : i32 to vector<256x256xi32>
    %3 = arith.andi %1, %2 : vector<256x256xi32>
    %c1_i32 = arith.constant 1 : i32
    %4 = vector.broadcast %c1_i32 : i32 to vector<256x256xi32>
    %5 = arith.addi %1, %4 : vector<256x256xi32>
    %6 = arith.cmpi eq, %0, %5 : vector<256x256xi32>
    %c15_i32_0 = arith.constant 15 : i32
    %7 = vector.broadcast %c15_i32_0 : i32 to vector<256x256xi32>
    %8 = arith.cmpi ne, %3, %7 : vector<256x256xi32>
    %9 = arith.andi %6, %8 : vector<256x256xi1>
    %cst = arith.constant 1.000000e+00 : f32
    %cst_1 = arith.constant 0.000000e+00 : f32
    %10 = vector.broadcast %cst : f32 to vector<256x256xf32>
    %11 = vector.broadcast %cst_1 : f32 to vector<256x256xf32>
    %12 = arith.select %9, %10, %11 : vector<256x256xi1>, vector<256x256xf32>
    %c16_i32 = arith.constant 16 : i32
    %13 = vector.broadcast %c16_i32 : i32 to vector<256x256xi32>
    %14 = arith.addi %1, %13 : vector<256x256xi32>
    %15 = arith.cmpi eq, %0, %14 : vector<256x256xi32>
    %c240_i32 = arith.constant 240 : i32
    %16 = vector.broadcast %c240_i32 : i32 to vector<256x256xi32>
    %17 = arith.cmpi slt, %1, %16 : vector<256x256xi32>
    %18 = arith.andi %15, %17 : vector<256x256xi1>
    %cst_2 = arith.constant 1.000000e+00 : f32
    %cst_3 = arith.constant 0.000000e+00 : f32
    %19 = vector.broadcast %cst_2 : f32 to vector<256x256xf32>
    %20 = vector.broadcast %cst_3 : f32 to vector<256x256xf32>
    %21 = arith.select %18, %19, %20 : vector<256x256xi1>, vector<256x256xf32>
    %22 = tpu.iota {dimensions = array<i32: 0>} : vector<256x32xi32>
    %23 = tpu.iota {dimensions = array<i32: 1>} : vector<256x32xi32>
    %c15_i32_4 = arith.constant 15 : i32
    %24 = vector.broadcast %c15_i32_4 : i32 to vector<256x32xi32>
    %25 = arith.andi %22, %24 : vector<256x32xi32>
    %c2_i32 = arith.constant 2 : i32
    %26 = vector.broadcast %c2_i32 : i32 to vector<256x32xi32>
    %27 = arith.muli %26, %25 : vector<256x32xi32>
    %28 = arith.cmpi eq, %23, %27 : vector<256x32xi32>
    %cst_5 = arith.constant 1.000000e+00 : f32
    %cst_6 = arith.constant 0.000000e+00 : f32
    %29 = vector.broadcast %cst_5 : f32 to vector<256x32xf32>
    %30 = vector.broadcast %cst_6 : f32 to vector<256x32xf32>
    %31 = arith.select %28, %29, %30 : vector<256x32xi1>, vector<256x32xf32>
    %c1_i32_7 = arith.constant 1 : i32
    %32 = vector.broadcast %c1_i32_7 : i32 to vector<256x32xi32>
    %33 = arith.addi %27, %32 : vector<256x32xi32>
    %34 = arith.cmpi eq, %23, %33 : vector<256x32xi32>
    %cst_8 = arith.constant 1.000000e+00 : f32
    %cst_9 = arith.constant 0.000000e+00 : f32
    %35 = vector.broadcast %cst_8 : f32 to vector<256x32xf32>
    %36 = vector.broadcast %cst_9 : f32 to vector<256x32xf32>
    %37 = arith.select %34, %35, %36 : vector<256x32xi1>, vector<256x32xf32>
    %c0 = arith.constant 0 : index
    %c0_10 = arith.constant 0 : index
    %38 = vector.load %arg2[%c0, %c0_10] : memref<64x8xf32, #tpu.memory_space<vmem>>, vector<64x8xf32>
    %c0_11 = arith.constant 0 : index
    %c0_12 = arith.constant 0 : index
    %39 = vector.load %arg3[%c0_11, %c0_12] : memref<64x8xf32, #tpu.memory_space<vmem>>, vector<64x8xf32>
    %c0_13 = arith.constant 0 : index
    %c0_14 = arith.constant 0 : index
    %40 = vector.load %arg4[%c0_13, %c0_14] : memref<64x8xf32, #tpu.memory_space<vmem>>, vector<64x8xf32>
    %c0_15 = arith.constant 0 : index
    %c0_16 = arith.constant 0 : index
    %41 = vector.load %arg5[%c0_15, %c0_16] : memref<64x8xf32, #tpu.memory_space<vmem>>, vector<64x8xf32>
    %c0_17 = arith.constant 0 : index
    %c0_18 = arith.constant 0 : index
    %42 = vector.load %arg6[%c0_17, %c0_18] : memref<16x1xf32, #tpu.memory_space<vmem>>, vector<16x1xf32>
    %c0_19 = arith.constant 0 : index
    %c0_20 = arith.constant 0 : index
    %c0_21 = arith.constant 0 : index
    %43 = vector.load %arg1[%c0_19, %c0_20, %c0_21] : memref<2x8x256xf32, #tpu.memory_space<vmem>>, vector<1x8x256xf32>
    %44 = vector.shape_cast %43 : vector<1x8x256xf32> to vector<8x256xf32>
    %cst_22 = arith.constant dense<0.000000e+00> : vector<8x256xf32>
    %45 = tpu.matmul %44, %12, %cst_22 {dimension_numbers = #tpu.dot_dimension_numbers<[1], [0], [0], [1], [0, 0, 1, 1], [], []>} : vector<8x256xf32>, vector<256x256xf32>, vector<8x256xf32> -> vector<8x256xf32>
    %cst_23 = arith.constant dense<0.000000e+00> : vector<8x256xf32>
    %46 = tpu.matmul %44, %21, %cst_23 {dimension_numbers = #tpu.dot_dimension_numbers<[1], [0], [0], [1], [0, 0, 1, 1], [], []>} : vector<8x256xf32>, vector<256x256xf32>, vector<8x256xf32> -> vector<8x256xf32>
    %cst_24 = arith.constant dense<0.000000e+00> : vector<8x256xf32>
    %47 = tpu.matmul %46, %12, %cst_24 {dimension_numbers = #tpu.dot_dimension_numbers<[1], [0], [0], [1], [0, 0, 1, 1], [], []>} : vector<8x256xf32>, vector<256x256xf32>, vector<8x256xf32> -> vector<8x256xf32>
    %cst_25 = arith.constant dense<0.000000e+00> : vector<64x256xf32>
    %48 = tpu.matmul %38, %44, %cst_25 {dimension_numbers = #tpu.dot_dimension_numbers<[1], [0], [0], [1], [0, 0, 1, 1], [], []>} : vector<64x8xf32>, vector<8x256xf32>, vector<64x256xf32> -> vector<64x256xf32>
    %cst_26 = arith.constant dense<0.000000e+00> : vector<64x256xf32>
    %49 = tpu.matmul %39, %45, %cst_26 {dimension_numbers = #tpu.dot_dimension_numbers<[1], [0], [0], [1], [0, 0, 1, 1], [], []>} : vector<64x8xf32>, vector<8x256xf32>, vector<64x256xf32> -> vector<64x256xf32>
    %50 = arith.addf %48, %49 : vector<64x256xf32>
    %cst_27 = arith.constant dense<0.000000e+00> : vector<64x256xf32>
    %51 = tpu.matmul %40, %46, %cst_27 {dimension_numbers = #tpu.dot_dimension_numbers<[1], [0], [0], [1], [0, 0, 1, 1], [], []>} : vector<64x8xf32>, vector<8x256xf32>, vector<64x256xf32> -> vector<64x256xf32>
    %52 = arith.addf %50, %51 : vector<64x256xf32>
    %cst_28 = arith.constant dense<0.000000e+00> : vector<64x256xf32>
    %53 = tpu.matmul %41, %47, %cst_28 {dimension_numbers = #tpu.dot_dimension_numbers<[1], [0], [0], [1], [0, 0, 1, 1], [], []>} : vector<64x8xf32>, vector<8x256xf32>, vector<64x256xf32> -> vector<64x256xf32>
    %54 = arith.addf %52, %53 : vector<64x256xf32>
    %55 = vector.extract_strided_slice %54 {offsets = [0, 0], sizes = [16, 256], strides = [1, 1]} : vector<64x256xf32> to vector<16x256xf32>
    %cst_29 = arith.constant dense<0x7F800000> : vector<256xf32>
    %56 = vector.multi_reduction <minimumf>, %55, %cst_29 [0] : vector<16x256xf32> to vector<256xf32>
    %57 = vector.shape_cast %56 : vector<256xf32> to vector<1x256xf32>
    %58 = vector.extract_strided_slice %54 {offsets = [16, 0], sizes = [16, 256], strides = [1, 1]} : vector<64x256xf32> to vector<16x256xf32>
    %cst_30 = arith.constant dense<0x7F800000> : vector<256xf32>
    %59 = vector.multi_reduction <minimumf>, %58, %cst_30 [0] : vector<16x256xf32> to vector<256xf32>
    %60 = vector.shape_cast %59 : vector<256xf32> to vector<1x256xf32>
    %61 = vector.extract_strided_slice %54 {offsets = [32, 0], sizes = [16, 256], strides = [1, 1]} : vector<64x256xf32> to vector<16x256xf32>
    %cst_31 = arith.constant dense<0x7F800000> : vector<256xf32>
    %62 = vector.multi_reduction <minimumf>, %61, %cst_31 [0] : vector<16x256xf32> to vector<256xf32>
    %63 = vector.shape_cast %62 : vector<256xf32> to vector<1x256xf32>
    %64 = vector.extract_strided_slice %54 {offsets = [48, 0], sizes = [16, 256], strides = [1, 1]} : vector<64x256xf32> to vector<16x256xf32>
    %cst_32 = arith.constant dense<0x7F800000> : vector<256xf32>
    %65 = vector.multi_reduction <minimumf>, %64, %cst_32 [0] : vector<16x256xf32> to vector<256xf32>
    %66 = vector.shape_cast %65 : vector<256xf32> to vector<1x256xf32>
    %67 = arith.addf %57, %63 : vector<1x256xf32>
    %cst_33 = arith.constant dense<0.000000e+00> : vector<1x32xf32>
    %68 = tpu.matmul %67, %31, %cst_33 {dimension_numbers = #tpu.dot_dimension_numbers<[1], [0], [0], [1], [0, 0, 1, 1], [], []>} : vector<1x256xf32>, vector<256x32xf32>, vector<1x32xf32> -> vector<1x32xf32>
    %69 = arith.addf %60, %66 : vector<1x256xf32>
    %cst_34 = arith.constant dense<0.000000e+00> : vector<1x32xf32>
    %70 = tpu.matmul %69, %37, %cst_34 {dimension_numbers = #tpu.dot_dimension_numbers<[1], [0], [0], [1], [0, 0, 1, 1], [], []>} : vector<1x256xf32>, vector<256x32xf32>, vector<1x32xf32> -> vector<1x32xf32>
    %71 = arith.addf %68, %70 : vector<1x32xf32>
    %cst_35 = arith.constant 0.707106769 : f32
    %72 = vector.broadcast %cst_35 : f32 to vector<1x32xf32>
    %73 = arith.mulf %71, %72 : vector<1x32xf32>
    %74 = math.absf %73 : vector<1x32xf32>
    %cst_36 = arith.constant 0.327591091 : f32
    %75 = vector.broadcast %cst_36 : f32 to vector<1x32xf32>
    %76 = arith.mulf %75, %74 : vector<1x32xf32>
    %cst_37 = arith.constant 1.000000e+00 : f32
    %77 = vector.broadcast %cst_37 : f32 to vector<1x32xf32>
    %78 = arith.addf %77, %76 : vector<1x32xf32>
    %cst_38 = arith.constant 1.000000e+00 : f32
    %79 = vector.broadcast %cst_38 : f32 to vector<1x32xf32>
    %80 = arith.divf %79, %78 : vector<1x32xf32>
    %cst_39 = arith.constant 1.06140542 : f32
    %81 = vector.broadcast %cst_39 : f32 to vector<1x32xf32>
    %82 = arith.mulf %80, %81 : vector<1x32xf32>
    %cst_40 = arith.constant -1.45315206 : f32
    %83 = vector.broadcast %cst_40 : f32 to vector<1x32xf32>
    %84 = arith.addf %83, %82 : vector<1x32xf32>
    %85 = arith.mulf %80, %84 : vector<1x32xf32>
    %cst_41 = arith.constant 1.42141378 : f32
    %86 = vector.broadcast %cst_41 : f32 to vector<1x32xf32>
    %87 = arith.addf %86, %85 : vector<1x32xf32>
    %88 = arith.mulf %80, %87 : vector<1x32xf32>
    %cst_42 = arith.constant -0.284496725 : f32
    %89 = vector.broadcast %cst_42 : f32 to vector<1x32xf32>
    %90 = arith.addf %89, %88 : vector<1x32xf32>
    %91 = arith.mulf %80, %90 : vector<1x32xf32>
    %cst_43 = arith.constant 0.254829586 : f32
    %92 = vector.broadcast %cst_43 : f32 to vector<1x32xf32>
    %93 = arith.addf %92, %91 : vector<1x32xf32>
    %94 = arith.mulf %80, %93 : vector<1x32xf32>
    %cst_44 = arith.constant 0.000000e+00 : f32
    %95 = vector.broadcast %cst_44 : f32 to vector<1x32xf32>
    %96 = arith.subf %95, %74 : vector<1x32xf32>
    %97 = arith.mulf %96, %74 : vector<1x32xf32>
    %98 = math.exp %97 : vector<1x32xf32>
    %99 = arith.mulf %94, %98 : vector<1x32xf32>
    %cst_45 = arith.constant 1.000000e+00 : f32
    %100 = vector.broadcast %cst_45 : f32 to vector<1x32xf32>
    %101 = arith.subf %100, %99 : vector<1x32xf32>
    %cst_46 = arith.constant 0.000000e+00 : f32
    %102 = vector.broadcast %cst_46 : f32 to vector<1x32xf32>
    %103 = arith.cmpf oge, %73, %102 : vector<1x32xf32>
    %cst_47 = arith.constant 0.000000e+00 : f32
    %104 = vector.broadcast %cst_47 : f32 to vector<1x32xf32>
    %105 = arith.subf %104, %101 : vector<1x32xf32>
    %106 = arith.select %103, %101, %105 : vector<1x32xi1>, vector<1x32xf32>
    %cst_48 = arith.constant 5.000000e-01 : f32
    %107 = vector.broadcast %cst_48 : f32 to vector<1x32xf32>
    %108 = arith.mulf %107, %71 : vector<1x32xf32>
    %cst_49 = arith.constant 1.000000e+00 : f32
    %109 = vector.broadcast %cst_49 : f32 to vector<1x32xf32>
    %110 = arith.addf %109, %106 : vector<1x32xf32>
    %111 = arith.mulf %108, %110 : vector<1x32xf32>
    %112 = vector.broadcast %42 : vector<16x1xf32> to vector<16x32xf32>
    %113 = vector.broadcast %111 : vector<1x32xf32> to vector<16x32xf32>
    %114 = arith.addf %112, %113 : vector<16x32xf32>
    %c0_50 = arith.constant 0 : index
    %c0_51 = arith.constant 0 : index
    %c0_52 = arith.constant 0 : index
    %115 = vector.load %arg7[%c0_50, %c0_51, %c0_52] : memref<2x16x32xf32, #tpu.memory_space<vmem>>, vector<1x16x32xf32>
    %116 = vector.shape_cast %115 : vector<1x16x32xf32> to vector<16x32xf32>
    %117 = vector.shape_cast %114 : vector<16x32xf32> to vector<1x16x32xf32>
    tpu.vector_store %arg7[%c0_50, %c0_51, %c0_52], %117 {strides = array<i32>} : memref<2x16x32xf32, #tpu.memory_space<vmem>>, vector<1x16x32xf32>,
    %c1 = arith.constant 1 : index
    %c0_53 = arith.constant 0 : index
    %c0_54 = arith.constant 0 : index
    %118 = vector.load %arg1[%c1, %c0_53, %c0_54] : memref<2x8x256xf32, #tpu.memory_space<vmem>>, vector<1x8x256xf32>
    %119 = vector.shape_cast %118 : vector<1x8x256xf32> to vector<8x256xf32>
    %cst_55 = arith.constant dense<0.000000e+00> : vector<8x256xf32>
    %120 = tpu.matmul %119, %12, %cst_55 {dimension_numbers = #tpu.dot_dimension_numbers<[1], [0], [0], [1], [0, 0, 1, 1], [], []>} : vector<8x256xf32>, vector<256x256xf32>, vector<8x256xf32> -> vector<8x256xf32>
    %cst_56 = arith.constant dense<0.000000e+00> : vector<8x256xf32>
    %121 = tpu.matmul %119, %21, %cst_56 {dimension_numbers = #tpu.dot_dimension_numbers<[1], [0], [0], [1], [0, 0, 1, 1], [], []>} : vector<8x256xf32>, vector<256x256xf32>, vector<8x256xf32> -> vector<8x256xf32>
    %cst_57 = arith.constant dense<0.000000e+00> : vector<8x256xf32>
    %122 = tpu.matmul %121, %12, %cst_57 {dimension_numbers = #tpu.dot_dimension_numbers<[1], [0], [0], [1], [0, 0, 1, 1], [], []>} : vector<8x256xf32>, vector<256x256xf32>, vector<8x256xf32> -> vector<8x256xf32>
    %cst_58 = arith.constant dense<0.000000e+00> : vector<64x256xf32>
    %123 = tpu.matmul %38, %119, %cst_58 {dimension_numbers = #tpu.dot_dimension_numbers<[1], [0], [0], [1], [0, 0, 1, 1], [], []>} : vector<64x8xf32>, vector<8x256xf32>, vector<64x256xf32> -> vector<64x256xf32>
    %cst_59 = arith.constant dense<0.000000e+00> : vector<64x256xf32>
    %124 = tpu.matmul %39, %120, %cst_59 {dimension_numbers = #tpu.dot_dimension_numbers<[1], [0], [0], [1], [0, 0, 1, 1], [], []>} : vector<64x8xf32>, vector<8x256xf32>, vector<64x256xf32> -> vector<64x256xf32>
    %125 = arith.addf %123, %124 : vector<64x256xf32>
    %cst_60 = arith.constant dense<0.000000e+00> : vector<64x256xf32>
    %126 = tpu.matmul %40, %121, %cst_60 {dimension_numbers = #tpu.dot_dimension_numbers<[1], [0], [0], [1], [0, 0, 1, 1], [], []>} : vector<64x8xf32>, vector<8x256xf32>, vector<64x256xf32> -> vector<64x256xf32>
    %127 = arith.addf %125, %126 : vector<64x256xf32>
    %cst_61 = arith.constant dense<0.000000e+00> : vector<64x256xf32>
    %128 = tpu.matmul %41, %122, %cst_61 {dimension_numbers = #tpu.dot_dimension_numbers<[1], [0], [0], [1], [0, 0, 1, 1], [], []>} : vector<64x8xf32>, vector<8x256xf32>, vector<64x256xf32> -> vector<64x256xf32>
    %129 = arith.addf %127, %128 : vector<64x256xf32>
    %130 = vector.extract_strided_slice %129 {offsets = [0, 0], sizes = [16, 256], strides = [1, 1]} : vector<64x256xf32> to vector<16x256xf32>
    %cst_62 = arith.constant dense<0x7F800000> : vector<256xf32>
    %131 = vector.multi_reduction <minimumf>, %130, %cst_62 [0] : vector<16x256xf32> to vector<256xf32>
    %132 = vector.shape_cast %131 : vector<256xf32> to vector<1x256xf32>
    %133 = vector.extract_strided_slice %129 {offsets = [16, 0], sizes = [16, 256], strides = [1, 1]} : vector<64x256xf32> to vector<16x256xf32>
    %cst_63 = arith.constant dense<0x7F800000> : vector<256xf32>
    %134 = vector.multi_reduction <minimumf>, %133, %cst_63 [0] : vector<16x256xf32> to vector<256xf32>
    %135 = vector.shape_cast %134 : vector<256xf32> to vector<1x256xf32>
    %136 = vector.extract_strided_slice %129 {offsets = [32, 0], sizes = [16, 256], strides = [1, 1]} : vector<64x256xf32> to vector<16x256xf32>
    %cst_64 = arith.constant dense<0x7F800000> : vector<256xf32>
    %137 = vector.multi_reduction <minimumf>, %136, %cst_64 [0] : vector<16x256xf32> to vector<256xf32>
    %138 = vector.shape_cast %137 : vector<256xf32> to vector<1x256xf32>
    %139 = vector.extract_strided_slice %129 {offsets = [48, 0], sizes = [16, 256], strides = [1, 1]} : vector<64x256xf32> to vector<16x256xf32>
    %cst_65 = arith.constant dense<0x7F800000> : vector<256xf32>
    %140 = vector.multi_reduction <minimumf>, %139, %cst_65 [0] : vector<16x256xf32> to vector<256xf32>
    %141 = vector.shape_cast %140 : vector<256xf32> to vector<1x256xf32>
    %142 = arith.addf %132, %138 : vector<1x256xf32>
    %cst_66 = arith.constant dense<0.000000e+00> : vector<1x32xf32>
    %143 = tpu.matmul %142, %31, %cst_66 {dimension_numbers = #tpu.dot_dimension_numbers<[1], [0], [0], [1], [0, 0, 1, 1], [], []>} : vector<1x256xf32>, vector<256x32xf32>, vector<1x32xf32> -> vector<1x32xf32>
    %144 = arith.addf %135, %141 : vector<1x256xf32>
    %cst_67 = arith.constant dense<0.000000e+00> : vector<1x32xf32>
    %145 = tpu.matmul %144, %37, %cst_67 {dimension_numbers = #tpu.dot_dimension_numbers<[1], [0], [0], [1], [0, 0, 1, 1], [], []>} : vector<1x256xf32>, vector<256x32xf32>, vector<1x32xf32> -> vector<1x32xf32>
    %146 = arith.addf %143, %145 : vector<1x32xf32>
    %cst_68 = arith.constant 0.707106769 : f32
    %147 = vector.broadcast %cst_68 : f32 to vector<1x32xf32>
    %148 = arith.mulf %146, %147 : vector<1x32xf32>
    %149 = math.absf %148 : vector<1x32xf32>
    %cst_69 = arith.constant 0.327591091 : f32
    %150 = vector.broadcast %cst_69 : f32 to vector<1x32xf32>
    %151 = arith.mulf %150, %149 : vector<1x32xf32>
    %cst_70 = arith.constant 1.000000e+00 : f32
    %152 = vector.broadcast %cst_70 : f32 to vector<1x32xf32>
    %153 = arith.addf %152, %151 : vector<1x32xf32>
    %cst_71 = arith.constant 1.000000e+00 : f32
    %154 = vector.broadcast %cst_71 : f32 to vector<1x32xf32>
    %155 = arith.divf %154, %153 : vector<1x32xf32>
    %cst_72 = arith.constant 1.06140542 : f32
    %156 = vector.broadcast %cst_72 : f32 to vector<1x32xf32>
    %157 = arith.mulf %155, %156 : vector<1x32xf32>
    %cst_73 = arith.constant -1.45315206 : f32
    %158 = vector.broadcast %cst_73 : f32 to vector<1x32xf32>
    %159 = arith.addf %158, %157 : vector<1x32xf32>
    %160 = arith.mulf %155, %159 : vector<1x32xf32>
    %cst_74 = arith.constant 1.42141378 : f32
    %161 = vector.broadcast %cst_74 : f32 to vector<1x32xf32>
    %162 = arith.addf %161, %160 : vector<1x32xf32>
    %163 = arith.mulf %155, %162 : vector<1x32xf32>
    %cst_75 = arith.constant -0.284496725 : f32
    %164 = vector.broadcast %cst_75 : f32 to vector<1x32xf32>
    %165 = arith.addf %164, %163 : vector<1x32xf32>
    %166 = arith.mulf %155, %165 : vector<1x32xf32>
    %cst_76 = arith.constant 0.254829586 : f32
    %167 = vector.broadcast %cst_76 : f32 to vector<1x32xf32>
    %168 = arith.addf %167, %166 : vector<1x32xf32>
    %169 = arith.mulf %155, %168 : vector<1x32xf32>
    %cst_77 = arith.constant 0.000000e+00 : f32
    %170 = vector.broadcast %cst_77 : f32 to vector<1x32xf32>
    %171 = arith.subf %170, %149 : vector<1x32xf32>
    %172 = arith.mulf %171, %149 : vector<1x32xf32>
    %173 = math.exp %172 : vector<1x32xf32>
    %174 = arith.mulf %169, %173 : vector<1x32xf32>
    %cst_78 = arith.constant 1.000000e+00 : f32
    %175 = vector.broadcast %cst_78 : f32 to vector<1x32xf32>
    %176 = arith.subf %175, %174 : vector<1x32xf32>
    %cst_79 = arith.constant 0.000000e+00 : f32
    %177 = vector.broadcast %cst_79 : f32 to vector<1x32xf32>
    %178 = arith.cmpf oge, %148, %177 : vector<1x32xf32>
    %cst_80 = arith.constant 0.000000e+00 : f32
    %179 = vector.broadcast %cst_80 : f32 to vector<1x32xf32>
    %180 = arith.subf %179, %176 : vector<1x32xf32>
    %181 = arith.select %178, %176, %180 : vector<1x32xi1>, vector<1x32xf32>
    %cst_81 = arith.constant 5.000000e-01 : f32
    %182 = vector.broadcast %cst_81 : f32 to vector<1x32xf32>
    %183 = arith.mulf %182, %146 : vector<1x32xf32>
    %cst_82 = arith.constant 1.000000e+00 : f32
    %184 = vector.broadcast %cst_82 : f32 to vector<1x32xf32>
    %185 = arith.addf %184, %181 : vector<1x32xf32>
    %186 = arith.mulf %183, %185 : vector<1x32xf32>
    %187 = vector.broadcast %42 : vector<16x1xf32> to vector<16x32xf32>
    %188 = vector.broadcast %186 : vector<1x32xf32> to vector<16x32xf32>
    %189 = arith.addf %187, %188 : vector<16x32xf32>
    %c1_83 = arith.constant 1 : index
    %c0_84 = arith.constant 0 : index
    %c0_85 = arith.constant 0 : index
    %190 = vector.load %arg7[%c1_83, %c0_84, %c0_85] : memref<2x16x32xf32, #tpu.memory_space<vmem>>, vector<1x16x32xf32>
    %191 = vector.shape_cast %190 : vector<1x16x32xf32> to vector<16x32xf32>
    %192 = vector.shape_cast %189 : vector<16x32xf32> to vector<1x16x32xf32>
    tpu.vector_store %arg7[%c1_83, %c0_84, %c0_85], %192 {strides = array<i32>} : memref<2x16x32xf32, #tpu.memory_space<vmem>>, vector<1x16x32xf32>,
    return
  }
  func.func @transform_0(%arg0: i32) -> (i32, i32, i32) {
    %c0_i32 = arith.constant 0 : i32
    %c0_i32_0 = arith.constant 0 : i32
    %c0_i32_1 = arith.constant 0 : i32
    %c0_i32_2 = arith.constant 0 : i32
    return %c0_i32, %c0_i32_0, %c0_i32_1 : i32, i32, i32
  }
  func.func @transform_1(%arg0: i32) -> (i32, i32) {
    %c0_i32 = arith.constant 0 : i32
    %c0_i32_0 = arith.constant 0 : i32
    %c0_i32_1 = arith.constant 0 : i32
    return %c0_i32, %c0_i32_0 : i32, i32
  }
  func.func @transform_2(%arg0: i32) -> (i32, i32) {
    %c0_i32 = arith.constant 0 : i32
    %c0_i32_0 = arith.constant 0 : i32
    %c0_i32_1 = arith.constant 0 : i32
    return %c0_i32, %c0_i32_0 : i32, i32
  }
  func.func @transform_3(%arg0: i32) -> (i32, i32) {
    %c0_i32 = arith.constant 0 : i32
    %c0_i32_0 = arith.constant 0 : i32
    %c0_i32_1 = arith.constant 0 : i32
    return %c0_i32, %c0_i32_0 : i32, i32
  }
  func.func @transform_4(%arg0: i32) -> (i32, i32) {
    %c0_i32 = arith.constant 0 : i32
    %c0_i32_0 = arith.constant 0 : i32
    %c0_i32_1 = arith.constant 0 : i32
    return %c0_i32, %c0_i32_0 : i32, i32
  }
  func.func @transform_5(%arg0: i32) -> (i32, i32) {
    %c0_i32 = arith.constant 0 : i32
    %c0_i32_0 = arith.constant 0 : i32
    %c0_i32_1 = arith.constant 0 : i32
    return %c0_i32, %c0_i32_0 : i32, i32
  }
  func.func @transform_6(%arg0: i32) -> (i32, i32, i32) {
    %c0_i32 = arith.constant 0 : i32
    %c0_i32_0 = arith.constant 0 : i32
    %c0_i32_1 = arith.constant 0 : i32
    %c0_i32_2 = arith.constant 0 : i32
    return %c0_i32, %c0_i32_0, %c0_i32_1 : i32, i32, i32
  }
}

</mosaic_0001>

<llo_original>
// kernel: model_forward.1
$region0: #{model_forward.1}
  #allocation0 [shape = 'u32[]', space=smem, size = 0x4, offset = 0x4, fixed_abs, tag = 'smem constant byte address 0x4 - core index']
  #allocation1 [shape = 'u32[144,128]{1,0:T(1,128)}', space=vmem, size = 0x12000, scoped, tag = 'internal scratch']
  %s0 = inlined_call_operand.vmem [shape: f32[2,8,256], index: 0, kind: input, shape index: {}]
  %s1 = inlined_call_operand.vmem [shape: f32[64,8], index: 1, kind: input, shape index: {}]
  %s2 = inlined_call_operand.vmem [shape: f32[64,8], index: 2, kind: input, shape index: {}]
  %s3 = inlined_call_operand.vmem [shape: f32[64,8], index: 3, kind: input, shape index: {}]
  %s4 = inlined_call_operand.vmem [shape: f32[64,8], index: 4, kind: input, shape index: {}]
  %s5 = inlined_call_operand.vmem [shape: f32[16,1], index: 5, kind: input, shape index: {}]
  %s6 = inlined_call_operand.hbm [shape: f32[2,16,32], index: 6, kind: output, shape index: {}]
  %s7 = sld [smem:[#allocation0]]
  $region34: #{model_forward.1} parent=0
    _
  %s9 = ssub.s32 1, %s7
  %s10 = scalar_select 0, %s9, %s7
  $region1: #{model_forward.1} parent=0
    #allocation2 [shape = 'u8[16384]{0}', space=vmem, size = 0x4000, scoped, tag = 'output window, operand 0, single buffered']
    #allocation3 [shape = 's32[1]{0}', space=sflag, size = 0x4, scoped, tag = 'scoped memory for model_forward.1']
    %11 = vsyncpa [#allocation3], 0
    // Predicated region
    $region2: #{model_forward.1} parent=1 // pred_check
      _
    $region3: #{model_forward.1} parent=1 // pred_check_branch
      %13 = sbr.rel (0) target = $region5
    $region4: #{model_forward.1} parent=1 // pred_region
      _
    $region5: #{model_forward.1} parent=1 // pred_fallthru
      _
    // Predicated region
    $region6: #{model_forward.1} parent=1 // pred_check
      _
    $region7: #{model_forward.1} parent=1 // pred_check_branch
      %15 = sbr.rel (0) target = $region9
    $region8: #{model_forward.1} parent=1 // pred_region
      _
    $region9: #{model_forward.1} parent=1 // pred_fallthru
      _
    // Predicated region
    $region10: #{model_forward.1} parent=1 // pred_check
      _
    $region11: #{model_forward.1} parent=1 // pred_check_branch
      %17 = sbr.rel (0) target = $region13
    $region12: #{model_forward.1} parent=1 // pred_region
      _
    $region13: #{model_forward.1} parent=1 // pred_fallthru
      _
    // Predicated region
    $region14: #{model_forward.1} parent=1 // pred_check
      _
    $region15: #{model_forward.1} parent=1 // pred_check_branch
      %19 = sbr.rel (0) target = $region17
    $region16: #{model_forward.1} parent=1 // pred_region
      _
    $region17: #{model_forward.1} parent=1 // pred_fallthru
      _
    // Predicated region
    $region18: #{model_forward.1} parent=1 // pred_check
      _
    $region19: #{model_forward.1} parent=1 // pred_check_branch
      %21 = sbr.rel (0) target = $region21
    $region20: #{model_forward.1} parent=1 // pred_region
      _
    $region21: #{model_forward.1} parent=1 // pred_fallthru
      _
    // Predicated region
    $region22: #{model_forward.1} parent=1 // pred_check
      _
    $region23: #{model_forward.1} parent=1 // pred_check_branch
      %23 = sbr.rel (0) target = $region25
    $region24: #{model_forward.1} parent=1 // pred_region
      _
    $region25: #{model_forward.1} parent=1 // pred_fallthru
      _
    %v24 = vlaneseq
    %v25 = vshrl.u32 %v24, 7
    %v26 = vadd.s32 %v25, 8
    %v27 = vadd.s32 %v25, 16
    %v28 = vadd.s32 %v25, 24
    %v29 = vadd.s32 %v25, 32
    %v30 = vadd.s32 %v25, 40
    %v31 = vadd.s32 %v25, 48
    %v32 = vadd.s32 %v25, 56
    %v33 = vadd.s32 %v25, 64
    %v34 = vadd.s32 %v25, 72
    %v35 = vadd.s32 %v25, 80
    %v36 = vadd.s32 %v25, 88
    %v37 = vadd.s32 %v25, 96
    %v38 = vadd.s32 %v25, 104
    %v39 = vadd.s32 %v25, 112
    %v40 = vadd.s32 %v25, 120
    %v41 = vadd.s32 %v25, 128
    %v42 = vadd.s32 %v25, 136
    %v43 = vadd.s32 %v25, 144
    %v44 = vadd.s32 %v25, 152
    %v45 = vadd.s32 %v25, 160
    %v46 = vadd.s32 %v25, 168
    %v47 = vadd.s32 %v25, 176
    %v48 = vadd.s32 %v25, 184
    %v49 = vadd.s32 %v25, 192
    %v50 = vadd.s32 %v25, 200
    %v51 = vadd.s32 %v25, 208
    %v52 = vadd.s32 %v25, 216
    %v53 = vadd.s32 %v25, 224
    %v54 = vadd.s32 %v25, 232
    %v55 = vadd.s32 %v25, 240
    %v56 = vadd.s32 %v25, 248
    %v57 = vlaneseq
    %v58 = vand.u32 %v57, 127
    %v59 = vadd.s32 %v58, 128
    %v60 = vand.u32 %v58, 15
    %v61 = vand.u32 %v59, 15
    %v62 = vadd.s32 %v58, 1
    %v63 = vadd.s32 %v59, 1
    %vm64 = vcmp.eq.s32.totalorder %v25, %v62
    %vm65 = vcmp.eq.s32.totalorder %v25, %v63
    %vm66 = vcmp.eq.s32.totalorder %v26, %v62
    %vm67 = vcmp.eq.s32.totalorder %v26, %v63
    %vm68 = vcmp.eq.s32.totalorder %v27, %v62
    %vm69 = vcmp.eq.s32.totalorder %v27, %v63
    %vm70 = vcmp.eq.s32.totalorder %v28, %v62
    %vm71 = vcmp.eq.s32.totalorder %v28, %v63
    %vm72 = vcmp.eq.s32.totalorder %v29, %v62
    %vm73 = vcmp.eq.s32.totalorder %v29, %v63
    %vm74 = vcmp.eq.s32.totalorder %v30, %v62
    %vm75 = vcmp.eq.s32.totalorder %v30, %v63
    %vm76 = vcmp.eq.s32.totalorder %v31, %v62
    %vm77 = vcmp.eq.s32.totalorder %v31, %v63
    %vm78 = vcmp.eq.s32.totalorder %v32, %v62
    %vm79 = vcmp.eq.s32.totalorder %v32, %v63
    %vm80 = vcmp.eq.s32.totalorder %v33, %v62
    %vm81 = vcmp.eq.s32.totalorder %v33, %v63
    %vm82 = vcmp.eq.s32.totalorder %v34, %v62
    %vm83 = vcmp.eq.s32.totalorder %v34, %v63
    %vm84 = vcmp.eq.s32.totalorder %v35, %v62
    %vm85 = vcmp.eq.s32.totalorder %v35, %v63
    %vm86 = vcmp.eq.s32.totalorder %v36, %v62
    %vm87 = vcmp.eq.s32.totalorder %v36, %v63
    %vm88 = vcmp.eq.s32.totalorder %v37, %v62
    %vm89 = vcmp.eq.s32.totalorder %v37, %v63
    %vm90 = vcmp.eq.s32.totalorder %v38, %v62
    %vm91 = vcmp.eq.s32.totalorder %v38, %v63
    %vm92 = vcmp.eq.s32.totalorder %v39, %v62
    %vm93 = vcmp.eq.s32.totalorder %v39, %v63
    %vm94 = vcmp.eq.s32.totalorder %v40, %v62
    %vm95 = vcmp.eq.s32.totalorder %v40, %v63
    %vm96 = vcmp.eq.s32.totalorder %v41, %v62
    %vm97 = vcmp.eq.s32.totalorder %v41, %v63
    %vm98 = vcmp.eq.s32.totalorder %v42, %v62
    %vm99 = vcmp.eq.s32.totalorder %v42, %v63
    %vm100 = vcmp.eq.s32.totalorder %v43, %v62
    %vm101 = vcmp.eq.s32.totalorder %v43, %v63
    %vm102 = vcmp.eq.s32.totalorder %v44, %v62
    %vm103 = vcmp.eq.s32.totalorder %v44, %v63
    %vm104 = vcmp.eq.s32.totalorder %v45, %v62
    %vm105 = vcmp.eq.s32.totalorder %v45, %v63
    %vm106 = vcmp.eq.s32.totalorder %v46, %v62
    %vm107 = vcmp.eq.s32.totalorder %v46, %v63
    %vm108 = vcmp.eq.s32.totalorder %v47, %v62
    %vm109 = vcmp.eq.s32.totalorder %v47, %v63
    %vm110 = vcmp.eq.s32.totalorder %v48, %v62
    %vm111 = vcmp.eq.s32.totalorder %v48, %v63
    %vm112 = vcmp.eq.s32.totalorder %v49, %v62
    %vm113 = vcmp.eq.s32.totalorder %v49, %v63
    %vm114 = vcmp.eq.s32.totalorder %v50, %v62
    %vm115 = vcmp.eq.s32.totalorder %v50, %v63
    %vm116 = vcmp.eq.s32.totalorder %v51, %v62
    %vm117 = vcmp.eq.s32.totalorder %v51, %v63
    %vm118 = vcmp.eq.s32.totalorder %v52, %v62
    %vm119 = vcmp.eq.s32.totalorder %v52, %v63
    %vm120 = vcmp.eq.s32.totalorder %v53, %v62
    %vm121 = vcmp.eq.s32.totalorder %v53, %v63
    %vm122 = vcmp.eq.s32.totalorder %v54, %v62
    %vm123 = vcmp.eq.s32.totalorder %v54, %v63
    %vm124 = vcmp.eq.s32.totalorder %v55, %v62
    %vm125 = vcmp.eq.s32.totalorder %v55, %v63
    %vm126 = vcmp.eq.s32.totalorder %v56, %v62
    %vm127 = vcmp.eq.s32.totalorder %v56, %v63
    %vm128 = vcmp.ne.s32.totalorder %v60, 15
    %vm129 = vcmp.ne.s32.totalorder %v61, 15
    %vm130 = vmand %vm64, %vm128
    %vm131 = vmand %vm65, %vm129
    %vm132 = vmand %vm66, %vm128
    %vm133 = vmand %vm67, %vm129
    %vm134 = vmand %vm68, %vm128
    %vm135 = vmand %vm69, %vm129
    %vm136 = vmand %vm70, %vm128
    %vm137 = vmand %vm71, %vm129
    %vm138 = vmand %vm72, %vm128
    %vm139 = vmand %vm73, %vm129
    %vm140 = vmand %vm74, %vm128
    %vm141 = vmand %vm75, %vm129
    %vm142 = vmand %vm76, %vm128
    %vm143 = vmand %vm77, %vm129
    %vm144 = vmand %vm78, %vm128
    %vm145 = vmand %vm79, %vm129
    %vm146 = vmand %vm80, %vm128
    %vm147 = vmand %vm81, %vm129
    %vm148 = vmand %vm82, %vm128
    %vm149 = vmand %vm83, %vm129
    %vm150 = vmand %vm84, %vm128
    %vm151 = vmand %vm85, %vm129
    %vm152 = vmand %vm86, %vm128
    %vm153 = vmand %vm87, %vm129
    %vm154 = vmand %vm88, %vm128
    %vm155 = vmand %vm89, %vm129
    %vm156 = vmand %vm90, %vm128
    %vm157 = vmand %vm91, %vm129
    %vm158 = vmand %vm92, %vm128
    %vm159 = vmand %vm93, %vm129
    %vm160 = vmand %vm94, %vm128
    %vm161 = vmand %vm95, %vm129
    %vm162 = vmand %vm96, %vm128
    %vm163 = vmand %vm97, %vm129
    %vm164 = vmand %vm98, %vm128
    %vm165 = vmand %vm99, %vm129
    %vm166 = vmand %vm100, %vm128
    %vm167 = vmand %vm101, %vm129
    %vm168 = vmand %vm102, %vm128
    %vm169 = vmand %vm103, %vm129
    %vm170 = vmand %vm104, %vm128
    %vm171 = vmand %vm105, %vm129
    %vm172 = vmand %vm106, %vm128
    %vm173 = vmand %vm107, %vm129
    %vm174 = vmand %vm108, %vm128
    %vm175 = vmand %vm109, %vm129
    %vm176 = vmand %vm110, %vm128
    %vm177 = vmand %vm111, %vm129
    %vm178 = vmand %vm112, %vm128
    %vm179 = vmand %vm113, %vm129
    %vm180 = vmand %vm114, %vm128
    %vm181 = vmand %vm115, %vm129
    %vm182 = vmand %vm116, %vm128
    %vm183 = vmand %vm117, %vm129
    %vm184 = vmand %vm118, %vm128
    %vm185 = vmand %vm119, %vm129
    %vm186 = vmand %vm120, %vm128
    %vm187 = vmand %vm121, %vm129
    %vm188 = vmand %vm122, %vm128
    %vm189 = vmand %vm123, %vm129
    %vm190 = vmand %vm124, %vm128
    %vm191 = vmand %vm125, %vm129
    %vm192 = vmand %vm126, %vm128
    %vm193 = vmand %vm127, %vm129
    %v194 = vsel %vm130, 1.0, 0.0
    %v195 = vsel %vm131, 1.0, 0.0
    %v196 = vsel %vm132, 1.0, 0.0
    %v197 = vsel %vm133, 1.0, 0.0
    %v198 = vsel %vm134, 1.0, 0.0
    %v199 = vsel %vm135, 1.0, 0.0
    %v200 = vsel %vm136, 1.0, 0.0
    %v201 = vsel %vm137, 1.0, 0.0
    %v202 = vsel %vm138, 1.0, 0.0
    %v203 = vsel %vm139, 1.0, 0.0
    %v204 = vsel %vm140, 1.0, 0.0
    %v205 = vsel %vm141, 1.0, 0.0
    %v206 = vsel %vm142, 1.0, 0.0
    %v207 = vsel %vm143, 1.0, 0.0
    %v208 = vsel %vm144, 1.0, 0.0
    %v209 = vsel %vm145, 1.0, 0.0
    %v210 = vsel %vm146, 1.0, 0.0
    %v211 = vsel %vm147, 1.0, 0.0
    %v212 = vsel %vm148, 1.0, 0.0
    %v213 = vsel %vm149, 1.0, 0.0
    %v214 = vsel %vm150, 1.0, 0.0
    %v215 = vsel %vm151, 1.0, 0.0
    %v216 = vsel %vm152, 1.0, 0.0
    %v217 = vsel %vm153, 1.0, 0.0
    %v218 = vsel %vm154, 1.0, 0.0
    %v219 = vsel %vm155, 1.0, 0.0
    %v220 = vsel %vm156, 1.0, 0.0
    %v221 = vsel %vm157, 1.0, 0.0
    %v222 = vsel %vm158, 1.0, 0.0
    %v223 = vsel %vm159, 1.0, 0.0
    %v224 = vsel %vm160, 1.0, 0.0
    %v225 = vsel %vm161, 1.0, 0.0
    %v226 = vsel %vm162, 1.0, 0.0
    %v227 = vsel %vm163, 1.0, 0.0
    %v228 = vsel %vm164, 1.0, 0.0
    %v229 = vsel %vm165, 1.0, 0.0
    %v230 = vsel %vm166, 1.0, 0.0
    %v231 = vsel %vm167, 1.0, 0.0
    %v232 = vsel %vm168, 1.0, 0.0
    %v233 = vsel %vm169, 1.0, 0.0
    %v234 = vsel %vm170, 1.0, 0.0
    %v235 = vsel %vm171, 1.0, 0.0
    %v236 = vsel %vm172, 1.0, 0.0
    %v237 = vsel %vm173, 1.0, 0.0
    %v238 = vsel %vm174, 1.0, 0.0
    %v239 = vsel %vm175, 1.0, 0.0
    %v240 = vsel %vm176, 1.0, 0.0
    %v241 = vsel %vm177, 1.0, 0.0
    %v242 = vsel %vm178, 1.0, 0.0
    %v243 = vsel %vm179, 1.0, 0.0
    %v244 = vsel %vm180, 1.0, 0.0
    %v245 = vsel %vm181, 1.0, 0.0
    %v246 = vsel %vm182, 1.0, 0.0
    %v247 = vsel %vm183, 1.0, 0.0
    %v248 = vsel %vm184, 1.0, 0.0
    %v249 = vsel %vm185, 1.0, 0.0
    %v250 = vsel %vm186, 1.0, 0.0
    %v251 = vsel %vm187, 1.0, 0.0
    %v252 = vsel %vm188, 1.0, 0.0
    %v253 = vsel %vm189, 1.0, 0.0
    %v254 = vsel %vm190, 1.0, 0.0
    %v255 = vsel %vm191, 1.0, 0.0
    %v256 = vsel %vm192, 1.0, 0.0
    %v257 = vsel %vm193, 1.0, 0.0
    %v258 = vadd.s32 %v58, 16
    %v259 = vadd.s32 %v59, 16
    %vm260 = vcmp.eq.s32.totalorder %v25, %v258
    %vm261 = vcmp.eq.s32.totalorder %v25, %v259
    %vm262 = vcmp.eq.s32.totalorder %v26, %v258
    %vm263 = vcmp.eq.s32.totalorder %v26, %v259
    %vm264 = vcmp.eq.s32.totalorder %v27, %v258
    %vm265 = vcmp.eq.s32.totalorder %v27, %v259
    %vm266 = vcmp.eq.s32.totalorder %v28, %v258
    %vm267 = vcmp.eq.s32.totalorder %v28, %v259
    %vm268 = vcmp.eq.s32.totalorder %v29, %v258
    %vm269 = vcmp.eq.s32.totalorder %v29, %v259
    %vm270 = vcmp.eq.s32.totalorder %v30, %v258
    %vm271 = vcmp.eq.s32.totalorder %v30, %v259
    %vm272 = vcmp.eq.s32.totalorder %v31, %v258
    %vm273 = vcmp.eq.s32.totalorder %v31, %v259
    %vm274 = vcmp.eq.s32.totalorder %v32, %v258
    %vm275 = vcmp.eq.s32.totalorder %v32, %v259
    %vm276 = vcmp.eq.s32.totalorder %v33, %v258
    %vm277 = vcmp.eq.s32.totalorder %v33, %v259
    %vm278 = vcmp.eq.s32.totalorder %v34, %v258
    %vm279 = vcmp.eq.s32.totalorder %v34, %v259
    %vm280 = vcmp.eq.s32.totalorder %v35, %v258
    %vm281 = vcmp.eq.s32.totalorder %v35, %v259
    %vm282 = vcmp.eq.s32.totalorder %v36, %v258
    %vm283 = vcmp.eq.s32.totalorder %v36, %v259
    %vm284 = vcmp.eq.s32.totalorder %v37, %v258
    %vm285 = vcmp.eq.s32.totalorder %v37, %v259
    %vm286 = vcmp.eq.s32.totalorder %v38, %v258
    %vm287 = vcmp.eq.s32.totalorder %v38, %v259
    %vm288 = vcmp.eq.s32.totalorder %v39, %v258
    %vm289 = vcmp.eq.s32.totalorder %v39, %v259
    %vm290 = vcmp.eq.s32.totalorder %v40, %v258
    %vm291 = vcmp.eq.s32.totalorder %v40, %v259
    %vm292 = vcmp.eq.s32.totalorder %v41, %v258
    %vm293 = vcmp.eq.s32.totalorder %v41, %v259
    %vm294 = vcmp.eq.s32.totalorder %v42, %v258
    %vm295 = vcmp.eq.s32.totalorder %v42, %v259
    %vm296 = vcmp.eq.s32.totalorder %v43, %v258
    %vm297 = vcmp.eq.s32.totalorder %v43, %v259
    %vm298 = vcmp.eq.s32.totalorder %v44, %v258
    %vm299 = vcmp.eq.s32.totalorder %v44, %v259
    %vm300 = vcmp.eq.s32.totalorder %v45, %v258
    %vm301 = vcmp.eq.s32.totalorder %v45, %v259
    %vm302 = vcmp.eq.s32.totalorder %v46, %v258
    %vm303 = vcmp.eq.s32.totalorder %v46, %v259
    %vm304 = vcmp.eq.s32.totalorder %v47, %v258
    %vm305 = vcmp.eq.s32.totalorder %v47, %v259
    %vm306 = vcmp.eq.s32.totalorder %v48, %v258
    %vm307 = vcmp.eq.s32.totalorder %v48, %v259
    %vm308 = vcmp.eq.s32.totalorder %v49, %v258
    %vm309 = vcmp.eq.s32.totalorder %v49, %v259
    %vm310 = vcmp.eq.s32.totalorder %v50, %v258
    %vm311 = vcmp.eq.s32.totalorder %v50, %v259
    %vm312 = vcmp.eq.s32.totalorder %v51, %v258
    %vm313 = vcmp.eq.s32.totalorder %v51, %v259
    %vm314 = vcmp.eq.s32.totalorder %v52, %v258
    %vm315 = vcmp.eq.s32.totalorder %v52, %v259
    %vm316 = vcmp.eq.s32.totalorder %v53, %v258
    %vm317 = vcmp.eq.s32.totalorder %v53, %v259
    %vm318 = vcmp.eq.s32.totalorder %v54, %v258
    %vm319 = vcmp.eq.s32.totalorder %v54, %v259
    %vm320 = vcmp.eq.s32.totalorder %v55, %v258
    %vm321 = vcmp.eq.s32.totalorder %v55, %v259
    %vm322 = vcmp.eq.s32.totalorder %v56, %v258
    %vm323 = vcmp.eq.s32.totalorder %v56, %v259
    %vm324 = vcmp.lt.s32.totalorder %v58, 240
    %vm325 = vcmp.lt.s32.totalorder %v59, 240
    %vm326 = vmand %vm260, %vm324
    %vm327 = vmand %vm261, %vm325
    %vm328 = vmand %vm262, %vm324
    %vm329 = vmand %vm263, %vm325
    %vm330 = vmand %vm264, %vm324
    %vm331 = vmand %vm265, %vm325
    %vm332 = vmand %vm266, %vm324
    %vm333 = vmand %vm267, %vm325
    %vm334 = vmand %vm268, %vm324
    %vm335 = vmand %vm269, %vm325
    %vm336 = vmand %vm270, %vm324
    %vm337 = vmand %vm271, %vm325
    %vm338 = vmand %vm272, %vm324
    %vm339 = vmand %vm273, %vm325
    %vm340 = vmand %vm274, %vm324
    %vm341 = vmand %vm275, %vm325
    %vm342 = vmand %vm276, %vm324
    %vm343 = vmand %vm277, %vm325
    %vm344 = vmand %vm278, %vm324
    %vm345 = vmand %vm279, %vm325
    %vm346 = vmand %vm280, %vm324
    %vm347 = vmand %vm281, %vm325
    %vm348 = vmand %vm282, %vm324
    %vm349 = vmand %vm283, %vm325
    %vm350 = vmand %vm284, %vm324
    %vm351 = vmand %vm285, %vm325
    %vm352 = vmand %vm286, %vm324
    %vm353 = vmand %vm287, %vm325
    %vm354 = vmand %vm288, %vm324
    %vm355 = vmand %vm289, %vm325
    %vm356 = vmand %vm290, %vm324
    %vm357 = vmand %vm291, %vm325
    %vm358 = vmand %vm292, %vm324
    %vm359 = vmand %vm293, %vm325
    %vm360 = vmand %vm294, %vm324
    %vm361 = vmand %vm295, %vm325
    %vm362 = vmand %vm296, %vm324
    %vm363 = vmand %vm297, %vm325
    %vm364 = vmand %vm298, %vm324
    %vm365 = vmand %vm299, %vm325
    %vm366 = vmand %vm300, %vm324
    %vm367 = vmand %vm301, %vm325
    %vm368 = vmand %vm302, %vm324
    %vm369 = vmand %vm303, %vm325
    %vm370 = vmand %vm304, %vm324
    %vm371 = vmand %vm305, %vm325
    %vm372 = vmand %vm306, %vm324
    %vm373 = vmand %vm307, %vm325
    %vm374 = vmand %vm308, %vm324
    %vm375 = vmand %vm309, %vm325
    %vm376 = vmand %vm310, %vm324
    %vm377 = vmand %vm311, %vm325
    %vm378 = vmand %vm312, %vm324
    %vm379 = vmand %vm313, %vm325
    %vm380 = vmand %vm314, %vm324
    %vm381 = vmand %vm315, %vm325
    %vm382 = vmand %vm316, %vm324
    %vm383 = vmand %vm317, %vm325
    %vm384 = vmand %vm318, %vm324
    %vm385 = vmand %vm319, %vm325
    %vm386 = vmand %vm320, %vm324
    %vm387 = vmand %vm321, %vm325
    %vm388 = vmand %vm322, %vm324
    %vm389 = vmand %vm323, %vm325
    %v390 = vsel %vm326, 1.0, 0.0
    %v391 = vsel %vm327, 1.0, 0.0
    %v392 = vsel %vm328, 1.0, 0.0
    %v393 = vsel %vm329, 1.0, 0.0
    %v394 = vsel %vm330, 1.0, 0.0
    %v395 = vsel %vm331, 1.0, 0.0
    %v396 = vsel %vm332, 1.0, 0.0
    %v397 = vsel %vm333, 1.0, 0.0
    %v398 = vsel %vm334, 1.0, 0.0
    %v399 = vsel %vm335, 1.0, 0.0
    %v400 = vsel %vm336, 1.0, 0.0
    %v401 = vsel %vm337, 1.0, 0.0
    %v402 = vsel %vm338, 1.0, 0.0
    %v403 = vsel %vm339, 1.0, 0.0
    %v404 = vsel %vm340, 1.0, 0.0
    %v405 = vsel %vm341, 1.0, 0.0
    %v406 = vsel %vm342, 1.0, 0.0
    %v407 = vsel %vm343, 1.0, 0.0
    %v408 = vsel %vm344, 1.0, 0.0
    %v409 = vsel %vm345, 1.0, 0.0
    %v410 = vsel %vm346, 1.0, 0.0
    %v411 = vsel %vm347, 1.0, 0.0
    %v412 = vsel %vm348, 1.0, 0.0
    %v413 = vsel %vm349, 1.0, 0.0
    %v414 = vsel %vm350, 1.0, 0.0
    %v415 = vsel %vm351, 1.0, 0.0
    %v416 = vsel %vm352, 1.0, 0.0
    %v417 = vsel %vm353, 1.0, 0.0
    %v418 = vsel %vm354, 1.0, 0.0
    %v419 = vsel %vm355, 1.0, 0.0
    %v420 = vsel %vm356, 1.0, 0.0
    %v421 = vsel %vm357, 1.0, 0.0
    %v422 = vsel %vm358, 1.0, 0.0
    %v423 = vsel %vm359, 1.0, 0.0
    %v424 = vsel %vm360, 1.0, 0.0
    %v425 = vsel %vm361, 1.0, 0.0
    %v426 = vsel %vm362, 1.0, 0.0
    %v427 = vsel %vm363, 1.0, 0.0
    %v428 = vsel %vm364, 1.0, 0.0
    %v429 = vsel %vm365, 1.0, 0.0
    %v430 = vsel %vm366, 1.0, 0.0
    %v431 = vsel %vm367, 1.0, 0.0
    %v432 = vsel %vm368, 1.0, 0.0
    %v433 = vsel %vm369, 1.0, 0.0
    %v434 = vsel %vm370, 1.0, 0.0
    %v435 = vsel %vm371, 1.0, 0.0
    %v436 = vsel %vm372, 1.0, 0.0
    %v437 = vsel %vm373, 1.0, 0.0
    %v438 = vsel %vm374, 1.0, 0.0
    %v439 = vsel %vm375, 1.0, 0.0
    %v440 = vsel %vm376, 1.0, 0.0
    %v441 = vsel %vm377, 1.0, 0.0
    %v442 = vsel %vm378, 1.0, 0.0
    %v443 = vsel %vm379, 1.0, 0.0
    %v444 = vsel %vm380, 1.0, 0.0
    %v445 = vsel %vm381, 1.0, 0.0
    %v446 = vsel %vm382, 1.0, 0.0
    %v447 = vsel %vm383, 1.0, 0.0
    %v448 = vsel %vm384, 1.0, 0.0
    %v449 = vsel %vm385, 1.0, 0.0
    %v450 = vsel %vm386, 1.0, 0.0
    %v451 = vsel %vm387, 1.0, 0.0
    %v452 = vsel %vm388, 1.0, 0.0
    %v453 = vsel %vm389, 1.0, 0.0
    %v454 = vand.u32 %v25, 15
    %v455 = vand.u32 %v26, 15
    %v456 = vand.u32 %v27, 15
    %v457 = vand.u32 %v28, 15
    %v458 = vand.u32 %v29, 15
    %v459 = vand.u32 %v30, 15
    %v460 = vand.u32 %v31, 15
    %v461 = vand.u32 %v32, 15
    %v462 = vand.u32 %v33, 15
    %v463 = vand.u32 %v34, 15
    %v464 = vand.u32 %v35, 15
    %v465 = vand.u32 %v36, 15
    %v466 = vand.u32 %v37, 15
    %v467 = vand.u32 %v38, 15
    %v468 = vand.u32 %v39, 15
    %v469 = vand.u32 %v40, 15
    %v470 = vand.u32 %v41, 15
    %v471 = vand.u32 %v42, 15
    %v472 = vand.u32 %v43, 15
    %v473 = vand.u32 %v44, 15
    %v474 = vand.u32 %v45, 15
    %v475 = vand.u32 %v46, 15
    %v476 = vand.u32 %v47, 15
    %v477 = vand.u32 %v48, 15
    %v478 = vand.u32 %v49, 15
    %v479 = vand.u32 %v50, 15
    %v480 = vand.u32 %v51, 15
    %v481 = vand.u32 %v52, 15
    %v482 = vand.u32 %v53, 15
    %v483 = vand.u32 %v54, 15
    %v484 = vand.u32 %v55, 15
    %v485 = vand.u32 %v56, 15
    %v486 = vmul.u32 %v454, 2
    %v487 = vmul.u32 %v455, 2
    %v488 = vmul.u32 %v456, 2
    %v489 = vmul.u32 %v457, 2
    %v490 = vmul.u32 %v458, 2
    %v491 = vmul.u32 %v459, 2
    %v492 = vmul.u32 %v460, 2
    %v493 = vmul.u32 %v461, 2
    %v494 = vmul.u32 %v462, 2
    %v495 = vmul.u32 %v463, 2
    %v496 = vmul.u32 %v464, 2
    %v497 = vmul.u32 %v465, 2
    %v498 = vmul.u32 %v466, 2
    %v499 = vmul.u32 %v467, 2
    %v500 = vmul.u32 %v468, 2
    %v501 = vmul.u32 %v469, 2
    %v502 = vmul.u32 %v470, 2
    %v503 = vmul.u32 %v471, 2
    %v504 = vmul.u32 %v472, 2
    %v505 = vmul.u32 %v473, 2
    %v506 = vmul.u32 %v474, 2
    %v507 = vmul.u32 %v475, 2
    %v508 = vmul.u32 %v476, 2
    %v509 = vmul.u32 %v477, 2
    %v510 = vmul.u32 %v478, 2
    %v511 = vmul.u32 %v479, 2
    %v512 = vmul.u32 %v480, 2
    %v513 = vmul.u32 %v481, 2
    %v514 = vmul.u32 %v482, 2
    %v515 = vmul.u32 %v483, 2
    %v516 = vmul.u32 %v484, 2
    %v517 = vmul.u32 %v485, 2
    %vm518 = vcmp.eq.s32.totalorder %v58, %v486
    %vm519 = vcmp.eq.s32.totalorder %v58, %v487
    %vm520 = vcmp.eq.s32.totalorder %v58, %v488
    %vm521 = vcmp.eq.s32.totalorder %v58, %v489
    %vm522 = vcmp.eq.s32.totalorder %v58, %v490
    %vm523 = vcmp.eq.s32.totalorder %v58, %v491
    %vm524 = vcmp.eq.s32.totalorder %v58, %v492
    %vm525 = vcmp.eq.s32.totalorder %v58, %v493
    %vm526 = vcmp.eq.s32.totalorder %v58, %v494
    %vm527 = vcmp.eq.s32.totalorder %v58, %v495
    %vm528 = vcmp.eq.s32.totalorder %v58, %v496
    %vm529 = vcmp.eq.s32.totalorder %v58, %v497
    %vm530 = vcmp.eq.s32.totalorder %v58, %v498
    %vm531 = vcmp.eq.s32.totalorder %v58, %v499
    %vm532 = vcmp.eq.s32.totalorder %v58, %v500
    %vm533 = vcmp.eq.s32.totalorder %v58, %v501
    %vm534 = vcmp.eq.s32.totalorder %v58, %v502
    %vm535 = vcmp.eq.s32.totalorder %v58, %v503
    %vm536 = vcmp.eq.s32.totalorder %v58, %v504
    %vm537 = vcmp.eq.s32.totalorder %v58, %v505
    %vm538 = vcmp.eq.s32.totalorder %v58, %v506
    %vm539 = vcmp.eq.s32.totalorder %v58, %v507
    %vm540 = vcmp.eq.s32.totalorder %v58, %v508
    %vm541 = vcmp.eq.s32.totalorder %v58, %v509
    %vm542 = vcmp.eq.s32.totalorder %v58, %v510
    %vm543 = vcmp.eq.s32.totalorder %v58, %v511
    %vm544 = vcmp.eq.s32.totalorder %v58, %v512
    %vm545 = vcmp.eq.s32.totalorder %v58, %v513
    %vm546 = vcmp.eq.s32.totalorder %v58, %v514
    %vm547 = vcmp.eq.s32.totalorder %v58, %v515
    %vm548 = vcmp.eq.s32.totalorder %v58, %v516
    %vm549 = vcmp.eq.s32.totalorder %v58, %v517
    %v550 = vsel %vm518, 1.0, 0.0
    %v551 = vsel %vm519, 1.0, 0.0
    %v552 = vsel %vm520, 1.0, 0.0
    %v553 = vsel %vm521, 1.0, 0.0
    %v554 = vsel %vm522, 1.0, 0.0
    %v555 = vsel %vm523, 1.0, 0.0
    %v556 = vsel %vm524, 1.0, 0.0
    %v557 = vsel %vm525, 1.0, 0.0
    %v558 = vsel %vm526, 1.0, 0.0
    %v559 = vsel %vm527, 1.0, 0.0
    %v560 = vsel %vm528, 1.0, 0.0
    %v561 = vsel %vm529, 1.0, 0.0
    %v562 = vsel %vm530, 1.0, 0.0
    %v563 = vsel %vm531, 1.0, 0.0
    %v564 = vsel %vm532, 1.0, 0.0
    %v565 = vsel %vm533, 1.0, 0.0
    %v566 = vsel %vm534, 1.0, 0.0
    %v567 = vsel %vm535, 1.0, 0.0
    %v568 = vsel %vm536, 1.0, 0.0
    %v569 = vsel %vm537, 1.0, 0.0
    %v570 = vsel %vm538, 1.0, 0.0
    %v571 = vsel %vm539, 1.0, 0.0
    %v572 = vsel %vm540, 1.0, 0.0
    %v573 = vsel %vm541, 1.0, 0.0
    %v574 = vsel %vm542, 1.0, 0.0
    %v575 = vsel %vm543, 1.0, 0.0
    %v576 = vsel %vm544, 1.0, 0.0
    %v577 = vsel %vm545, 1.0, 0.0
    %v578 = vsel %vm546, 1.0, 0.0
    %v579 = vsel %vm547, 1.0, 0.0
    %v580 = vsel %vm548, 1.0, 0.0
    %v581 = vsel %vm549, 1.0, 0.0
    %v582 = vadd.s32 %v486, 1
    %v583 = vadd.s32 %v487, 1
    %v584 = vadd.s32 %v488, 1
    %v585 = vadd.s32 %v489, 1
    %v586 = vadd.s32 %v490, 1
    %v587 = vadd.s32 %v491, 1
    %v588 = vadd.s32 %v492, 1
    %v589 = vadd.s32 %v493, 1
    %v590 = vadd.s32 %v494, 1
    %v591 = vadd.s32 %v495, 1
    %v592 = vadd.s32 %v496, 1
    %v593 = vadd.s32 %v497, 1
    %v594 = vadd.s32 %v498, 1
    %v595 = vadd.s32 %v499, 1
    %v596 = vadd.s32 %v500, 1
    %v597 = vadd.s32 %v501, 1
    %v598 = vadd.s32 %v502, 1
    %v599 = vadd.s32 %v503, 1
    %v600 = vadd.s32 %v504, 1
    %v601 = vadd.s32 %v505, 1
    %v602 = vadd.s32 %v506, 1
    %v603 = vadd.s32 %v507, 1
    %v604 = vadd.s32 %v508, 1
    %v605 = vadd.s32 %v509, 1
    %v606 = vadd.s32 %v510, 1
    %v607 = vadd.s32 %v511, 1
    %v608 = vadd.s32 %v512, 1
    %v609 = vadd.s32 %v513, 1
    %v610 = vadd.s32 %v514, 1
    %v611 = vadd.s32 %v515, 1
    %v612 = vadd.s32 %v516, 1
    %v613 = vadd.s32 %v517, 1
    %vm614 = vcmp.eq.s32.totalorder %v58, %v582
    %vm615 = vcmp.eq.s32.totalorder %v58, %v583
    %vm616 = vcmp.eq.s32.totalorder %v58, %v584
    %vm617 = vcmp.eq.s32.totalorder %v58, %v585
    %vm618 = vcmp.eq.s32.totalorder %v58, %v586
    %vm619 = vcmp.eq.s32.totalorder %v58, %v587
    %vm620 = vcmp.eq.s32.totalorder %v58, %v588
    %vm621 = vcmp.eq.s32.totalorder %v58, %v589
    %vm622 = vcmp.eq.s32.totalorder %v58, %v590
    %vm623 = vcmp.eq.s32.totalorder %v58, %v591
    %vm624 = vcmp.eq.s32.totalorder %v58, %v592
    %vm625 = vcmp.eq.s32.totalorder %v58, %v593
    %vm626 = vcmp.eq.s32.totalorder %v58, %v594
    %vm627 = vcmp.eq.s32.totalorder %v58, %v595
    %vm628 = vcmp.eq.s32.totalorder %v58, %v596
    %vm629 = vcmp.eq.s32.totalorder %v58, %v597
    %vm630 = vcmp.eq.s32.totalorder %v58, %v598
    %vm631 = vcmp.eq.s32.totalorder %v58, %v599
    %vm632 = vcmp.eq.s32.totalorder %v58, %v600
    %vm633 = vcmp.eq.s32.totalorder %v58, %v601
    %vm634 = vcmp.eq.s32.totalorder %v58, %v602
    %vm635 = vcmp.eq.s32.totalorder %v58, %v603
    %vm636 = vcmp.eq.s32.totalorder %v58, %v604
    %vm637 = vcmp.eq.s32.totalorder %v58, %v605
    %vm638 = vcmp.eq.s32.totalorder %v58, %v606
    %vm639 = vcmp.eq.s32.totalorder %v58, %v607
    %vm640 = vcmp.eq.s32.totalorder %v58, %v608
    %vm641 = vcmp.eq.s32.totalorder %v58, %v609
    %vm642 = vcmp.eq.s32.totalorder %v58, %v610
    %vm643 = vcmp.eq.s32.totalorder %v58, %v611
    %vm644 = vcmp.eq.s32.totalorder %v58, %v612
    %vm645 = vcmp.eq.s32.totalorder %v58, %v613
    %v646 = vsel %vm614, 1.0, 0.0
    %v647 = vsel %vm615, 1.0, 0.0
    %v648 = vsel %vm616, 1.0, 0.0
    %v649 = vsel %vm617, 1.0, 0.0
    %v650 = vsel %vm618, 1.0, 0.0
    %v651 = vsel %vm619, 1.0, 0.0
    %v652 = vsel %vm620, 1.0, 0.0
    %v653 = vsel %vm621, 1.0, 0.0
    %v654 = vsel %vm622, 1.0, 0.0
    %v655 = vsel %vm623, 1.0, 0.0
    %v656 = vsel %vm624, 1.0, 0.0
    %v657 = vsel %vm625, 1.0, 0.0
    %v658 = vsel %vm626, 1.0, 0.0
    %v659 = vsel %vm627, 1.0, 0.0
    %v660 = vsel %vm628, 1.0, 0.0
    %v661 = vsel %vm629, 1.0, 0.0
    %v662 = vsel %vm630, 1.0, 0.0
    %v663 = vsel %vm631, 1.0, 0.0
    %v664 = vsel %vm632, 1.0, 0.0
    %v665 = vsel %vm633, 1.0, 0.0
    %v666 = vsel %vm634, 1.0, 0.0
    %v667 = vsel %vm635, 1.0, 0.0
    %v668 = vsel %vm636, 1.0, 0.0
    %v669 = vsel %vm637, 1.0, 0.0
    %v670 = vsel %vm638, 1.0, 0.0
    %v671 = vsel %vm639, 1.0, 0.0
    %v672 = vsel %vm640, 1.0, 0.0
    %v673 = vsel %vm641, 1.0, 0.0
    %v674 = vsel %vm642, 1.0, 0.0
    %v675 = vsel %vm643, 1.0, 0.0
    %v676 = vsel %vm644, 1.0, 0.0
    %v677 = vsel %vm645, 1.0, 0.0
    %v678 = vld [vmem:[%s1] sm:$0xff]
    %v679 = vld [vmem:[%s1 + $0x8] sm:$0xff]
    %v680 = vld [vmem:[%s1 + $0x10] sm:$0xff]
    %v681 = vld [vmem:[%s1 + $0x18] sm:$0xff]
    %v682 = vld [vmem:[%s1 + $0x20] sm:$0xff]
    %v683 = vld [vmem:[%s1 + $0x28] sm:$0xff]
    %v684 = vld [vmem:[%s1 + $0x30] sm:$0xff]
    %v685 = vld [vmem:[%s1 + $0x38] sm:$0xff]
    %v686 = vld [vmem:[%s2] sm:$0xff]
    %v687 = vld [vmem:[%s2 + $0x8] sm:$0xff]
    %v688 = vld [vmem:[%s2 + $0x10] sm:$0xff]
    %v689 = vld [vmem:[%s2 + $0x18] sm:$0xff]
    %v690 = vld [vmem:[%s2 + $0x20] sm:$0xff]
    %v691 = vld [vmem:[%s2 + $0x28] sm:$0xff]
    %v692 = vld [vmem:[%s2 + $0x30] sm:$0xff]
    %v693 = vld [vmem:[%s2 + $0x38] sm:$0xff]
    %v694 = vld [vmem:[%s3] sm:$0xff]
    %v695 = vld [vmem:[%s3 + $0x8] sm:$0xff]
    %v696 = vld [vmem:[%s3 + $0x10] sm:$0xff]
    %v697 = vld [vmem:[%s3 + $0x18] sm:$0xff]
    %v698 = vld [vmem:[%s3 + $0x20] sm:$0xff]
    %v699 = vld [vmem:[%s3 + $0x28] sm:$0xff]
    %v700 = vld [vmem:[%s3 + $0x30] sm:$0xff]
    %v701 = vld [vmem:[%s3 + $0x38] sm:$0xff]
    %v702 = vld [vmem:[%s4] sm:$0xff]
    %v703 = vld [vmem:[%s4 + $0x8] sm:$0xff]
    %v704 = vld [vmem:[%s4 + $0x10] sm:$0xff]
    %v705 = vld [vmem:[%s4 + $0x18] sm:$0xff]
    %v706 = vld [vmem:[%s4 + $0x20] sm:$0xff]
    %v707 = vld [vmem:[%s4 + $0x28] sm:$0xff]
    %v708 = vld [vmem:[%s4 + $0x30] sm:$0xff]
    %v709 = vld [vmem:[%s4 + $0x38] sm:$0xff]
    %v710 = vld [vmem:[%s5] sm:$0xff]
    %v711 = vld [vmem:[%s5 + $0x8] sm:$0xff]
    %v712 = vld [vmem:[%s0] sm:$0xff]
    %v713 = vld [vmem:[%s0 + $0x8] sm:$0xff]
    %714 = vmatprep.subr.mxu0 %v225
    %715 = vmatpush1.msra.mxu0 %v224
    %716 = vmatprep.subr.mxu0 %v223
    %717 = vmatpush1.msra.mxu0 %v222
    %718 = vmatprep.subr.mxu0 %v221
    %719 = vmatpush1.msra.mxu0 %v220
    %720 = vmatprep.subr.mxu0 %v219
    %721 = vmatpush1.msra.mxu0 %v218
    %722 = vmatprep.subr.mxu0 %v217
    %723 = vmatpush1.msra.mxu0 %v216
    %724 = vmatprep.subr.mxu0 %v215
    %725 = vmatpush1.msra.mxu0 %v214
    %726 = vmatprep.subr.mxu0 %v213
    %727 = vmatpush1.msra.mxu0 %v212
    %728 = vmatprep.subr.mxu0 %v211
    %729 = vmatpush1.msra.mxu0 %v210
    %730 = vmatprep.subr.mxu0 %v209
    %731 = vmatpush1.msra.mxu0 %v208
    %732 = vmatprep.subr.mxu0 %v207
    %733 = vmatpush1.msra.mxu0 %v206
    %734 = vmatprep.subr.mxu0 %v205
    %735 = vmatpush1.msra.mxu0 %v204
    %736 = vmatprep.subr.mxu0 %v203
    %737 = vmatpush1.msra.mxu0 %v202
    %738 = vmatprep.subr.mxu0 %v201
    %739 = vmatpush1.msra.mxu0 %v200
    %740 = vmatprep.subr.mxu0 %v199
    %741 = vmatpush1.msra.mxu0 %v198
    %742 = vmatprep.subr.mxu0 %v197
    %743 = vmatpush1.msra.mxu0 %v196
    %744 = vmatprep.subr.mxu0 %v195
    %745 = vmatpush1.msra.mxu0 %v194
    %746 = vmatprep.subr.mxu0 %v257
    %747 = vmatpush2.msra.mxu0 %v256
    %748 = vmatprep.subr.mxu0 %v255
    %749 = vmatpush2.msra.mxu0 %v254
    %750 = vmatprep.subr.mxu0 %v253
    %751 = vmatpush2.msra.mxu0 %v252
    %752 = vmatprep.subr.mxu0 %v251
    %753 = vmatpush2.msra.mxu0 %v250
    %754 = vmatprep.subr.mxu0 %v249
    %755 = vmatpush2.msra.mxu0 %v248
    %756 = vmatprep.subr.mxu0 %v247
    %757 = vmatpush2.msra.mxu0 %v246
    %758 = vmatprep.subr.mxu0 %v245
    %759 = vmatpush2.msra.mxu0 %v244
    %760 = vmatprep.subr.mxu0 %v243
    %761 = vmatpush2.msra.mxu0 %v242
    %762 = vmatprep.subr.mxu0 %v241
    %763 = vmatpush2.msra.mxu0 %v240
    %764 = vmatprep.subr.mxu0 %v239
    %765 = vmatpush2.msra.mxu0 %v238
    %766 = vmatprep.subr.mxu0 %v237
    %767 = vmatpush2.msra.mxu0 %v236
    %768 = vmatprep.subr.mxu0 %v235
    %769 = vmatpush2.msra.mxu0 %v234
    %770 = vmatprep.subr.mxu0 %v233
    %771 = vmatpush2.msra.mxu0 %v232
    %772 = vmatprep.subr.mxu0 %v231
    %773 = vmatpush2.msra.mxu0 %v230
    %774 = vmatprep.subr.mxu0 %v229
    %775 = vmatpush2.msra.mxu0 %v228
    %776 = vmatprep.subr.mxu0 %v227
    %777 = vmatpush2.msra.mxu0 %v226
    %778 = vmatprep.mubr.f32.mxu0 %v713
    %779 = vmatmul.mubr.f32.gmra.mxu0 %v712
    %v780 = vpop.f32.mrf.mxu0
    %v781 = vadd.f32 0.0, %v780
    %v782 = vpop.f32.mrf.mxu0
    %v783 = vadd.f32 0.0, %v782
    %784 = vdwg.mxu0
    %785 = vmatprep.subr.mxu0 %v421
    %786 = vmatpush1.msra.mxu0 %v420
    %787 = vmatprep.subr.mxu0 %v419
    %788 = vmatpush1.msra.mxu0 %v418
    %789 = vmatprep.subr.mxu0 %v417
    %790 = vmatpush1.msra.mxu0 %v416
    %791 = vmatprep.subr.mxu0 %v415
    %792 = vmatpush1.msra.mxu0 %v414
    %793 = vmatprep.subr.mxu0 %v413
    %794 = vmatpush1.msra.mxu0 %v412
    %795 = vmatprep.subr.mxu0 %v411
    %796 = vmatpush1.msra.mxu0 %v410
    %797 = vmatprep.subr.mxu0 %v409
    %798 = vmatpush1.msra.mxu0 %v408
    %799 = vmatprep.subr.mxu0 %v407
    %800 = vmatpush1.msra.mxu0 %v406
    %801 = vmatprep.subr.mxu0 %v405
    %802 = vmatpush1.msra.mxu0 %v404
    %803 = vmatprep.subr.mxu0 %v403
    %804 = vmatpush1.msra.mxu0 %v402
    %805 = vmatprep.subr.mxu0 %v401
    %806 = vmatpush1.msra.mxu0 %v400
    %807 = vmatprep.subr.mxu0 %v399
    %808 = vmatpush1.msra.mxu0 %v398
    %809 = vmatprep.subr.mxu0 %v397
    %810 = vmatpush1.msra.mxu0 %v396
    %811 = vmatprep.subr.mxu0 %v395
    %812 = vmatpush1.msra.mxu0 %v394
    %813 = vmatprep.subr.mxu0 %v393
    %814 = vmatpush1.msra.mxu0 %v392
    %815 = vmatprep.subr.mxu0 %v391
    %816 = vmatpush1.msra.mxu0 %v390
    %817 = vmatprep.subr.mxu0 %v453
    %818 = vmatpush2.msra.mxu0 %v452
    %819 = vmatprep.subr.mxu0 %v451
    %820 = vmatpush2.msra.mxu0 %v450
    %821 = vmatprep.subr.mxu0 %v449
    %822 = vmatpush2.msra.mxu0 %v448
    %823 = vmatprep.subr.mxu0 %v447
    %824 = vmatpush2.msra.mxu0 %v446
    %825 = vmatprep.subr.mxu0 %v445
    %826 = vmatpush2.msra.mxu0 %v444
    %827 = vmatprep.subr.mxu0 %v443
    %828 = vmatpush2.msra.mxu0 %v442
    %829 = vmatprep.subr.mxu0 %v441
    %830 = vmatpush2.msra.mxu0 %v440
    %831 = vmatprep.subr.mxu0 %v439
    %832 = vmatpush2.msra.mxu0 %v438
    %833 = vmatprep.subr.mxu0 %v437
    %834 = vmatpush2.msra.mxu0 %v436
    %835 = vmatprep.subr.mxu0 %v435
    %836 = vmatpush2.msra.mxu0 %v434
    %837 = vmatprep.subr.mxu0 %v433
    %838 = vmatpush2.msra.mxu0 %v432
    %839 = vmatprep.subr.mxu0 %v431
    %840 = vmatpush2.msra.mxu0 %v430
    %841 = vmatprep.subr.mxu0 %v429
    %842 = vmatpush2.msra.mxu0 %v428
    %843 = vmatprep.subr.mxu0 %v427
    %844 = vmatpush2.msra.mxu0 %v426
    %845 = vmatprep.subr.mxu0 %v425
    %846 = vmatpush2.msra.mxu0 %v424
    %847 = vmatprep.subr.mxu0 %v423
    %848 = vmatpush2.msra.mxu0 %v422
    %849 = vmatprep.mubr.f32.mxu0 %v713
    %850 = vmatmul.mubr.f32.gmra.mxu0 %v712
    %v851 = vpop.f32.mrf.mxu0
    %v852 = vadd.f32 0.0, %v851
    %v853 = vpop.f32.mrf.mxu0
    %v854 = vadd.f32 0.0, %v853
    %855 = vdwg.mxu0
    %856 = vmatprep.subr.mxu0 %v225
    %857 = vmatpush1.msra.mxu0 %v224
    %858 = vmatprep.subr.mxu0 %v223
    %859 = vmatpush1.msra.mxu0 %v222
    %860 = vmatprep.subr.mxu0 %v221
    %861 = vmatpush1.msra.mxu0 %v220
    %862 = vmatprep.subr.mxu0 %v219
    %863 = vmatpush1.msra.mxu0 %v218
    %864 = vmatprep.subr.mxu0 %v217
    %865 = vmatpush1.msra.mxu0 %v216
    %866 = vmatprep.subr.mxu0 %v215
    %867 = vmatpush1.msra.mxu0 %v214
    %868 = vmatprep.subr.mxu0 %v213
    %869 = vmatpush1.msra.mxu0 %v212
    %870 = vmatprep.subr.mxu0 %v211
    %871 = vmatpush1.msra.mxu0 %v210
    %872 = vmatprep.subr.mxu0 %v209
    %873 = vmatpush1.msra.mxu0 %v208
    %874 = vmatprep.subr.mxu0 %v207
    %875 = vmatpush1.msra.mxu0 %v206
    %876 = vmatprep.subr.mxu0 %v205
    %877 = vmatpush1.msra.mxu0 %v204
    %878 = vmatprep.subr.mxu0 %v203
    %879 = vmatpush1.msra.mxu0 %v202
    %880 = vmatprep.subr.mxu0 %v201
    %881 = vmatpush1.msra.mxu0 %v200
    %882 = vmatprep.subr.mxu0 %v199
    %883 = vmatpush1.msra.mxu0 %v198
    %884 = vmatprep.subr.mxu0 %v197
    %885 = vmatpush1.msra.mxu0 %v196
    %886 = vmatprep.subr.mxu0 %v195
    %887 = vmatpush1.msra.mxu0 %v194
    %888 = vmatprep.subr.mxu0 %v257
    %889 = vmatpush2.msra.mxu0 %v256
    %890 = vmatprep.subr.mxu0 %v255
    %891 = vmatpush2.msra.mxu0 %v254
    %892 = vmatprep.subr.mxu0 %v253
    %893 = vmatpush2.msra.mxu0 %v252
    %894 = vmatprep.subr.mxu0 %v251
    %895 = vmatpush2.msra.mxu0 %v250
    %896 = vmatprep.subr.mxu0 %v249
    %897 = vmatpush2.msra.mxu0 %v248
    %898 = vmatprep.subr.mxu0 %v247
    %899 = vmatpush2.msra.mxu0 %v246
    %900 = vmatprep.subr.mxu0 %v245
    %901 = vmatpush2.msra.mxu0 %v244
    %902 = vmatprep.subr.mxu0 %v243
    %903 = vmatpush2.msra.mxu0 %v242
    %904 = vmatprep.subr.mxu0 %v241
    %905 = vmatpush2.msra.mxu0 %v240
    %906 = vmatprep.subr.mxu0 %v239
    %907 = vmatpush2.msra.mxu0 %v238
    %908 = vmatprep.subr.mxu0 %v237
    %909 = vmatpush2.msra.mxu0 %v236
    %910 = vmatprep.subr.mxu0 %v235
    %911 = vmatpush2.msra.mxu0 %v234
    %912 = vmatprep.subr.mxu0 %v233
    %913 = vmatpush2.msra.mxu0 %v232
    %914 = vmatprep.subr.mxu0 %v231
    %915 = vmatpush2.msra.mxu0 %v230
    %916 = vmatprep.subr.mxu0 %v229
    %917 = vmatpush2.msra.mxu0 %v228
    %918 = vmatprep.subr.mxu0 %v227
    %919 = vmatpush2.msra.mxu0 %v226
    %920 = vmatprep.mubr.f32.mxu0 %v854
    %921 = vmatmul.mubr.f32.gmra.mxu0 %v852
    %v922 = vpop.f32.mrf.mxu0
    %v923 = vadd.f32 0.0, %v922
    %v924 = vpop.f32.mrf.mxu0
    %v925 = vadd.f32 0.0, %v924
    %926 = vdwg.mxu0
    %vm927 = vcmask 64512
    %v929 = vsel %vm927, %v686, 0
    %v932 = vsel %vm927, %v687, 0
    %v935 = vsel %vm927, %v688, 0
    %v938 = vsel %vm927, %v689, 0
    %v941 = vsel %vm927, %v690, 0
    %v944 = vsel %vm927, %v691, 0
    %v947 = vsel %vm927, %v692, 0
    %v950 = vsel %vm927, %v693, 0
    %952 = vmatprep.subr.mxu0 0.0
    %953 = vmatpush1.msra.mxu0 0.0
    %954 = vmatprep.subr.mxu0 0.0
    %955 = vmatpush1.msra.mxu0 0.0
    %956 = vmatprep.subr.mxu0 0.0
    %957 = vmatpush1.msra.mxu0 0.0
    %958 = vmatprep.subr.mxu0 0.0
    %959 = vmatpush1.msra.mxu0 0.0
    %960 = vmatprep.subr.mxu0 0.0
    %961 = vmatpush1.msra.mxu0 0.0
    %962 = vmatprep.subr.mxu0 0.0
    %963 = vmatpush1.msra.mxu0 0.0
    %964 = vmatprep.subr.mxu0 0.0
    %965 = vmatpush1.msra.mxu0 0.0
    %966 = vmatprep.subr.mxu0 0.0
    %967 = vmatpush1.msra.mxu0 0.0
    %968 = vmatprep.subr.mxu0 0.0
    %969 = vmatpush1.msra.mxu0 0.0
    %970 = vmatprep.subr.mxu0 0.0
    %971 = vmatpush1.msra.mxu0 0.0
    %972 = vmatprep.subr.mxu0 0.0
    %973 = vmatpush1.msra.mxu0 0.0
    %974 = vmatprep.subr.mxu0 0.0
    %975 = vmatpush1.msra.mxu0 0.0
    %976 = vmatprep.subr.mxu0 0.0
    %977 = vmatpush1.msra.mxu0 0.0
    %978 = vmatprep.subr.mxu0 0.0
    %979 = vmatpush1.msra.mxu0 0.0
    %980 = vmatprep.subr.mxu0 0.0
    %981 = vmatpush1.msra.mxu0 0.0
    %982 = vmatprep.subr.mxu0 %v783
    %983 = vmatpush1.msra.mxu0 %v781
    %984 = vmatprep.subr.mxu0 0.0
    %985 = vmatpush2.msra.mxu0 0.0
    %986 = vmatprep.subr.mxu0 0.0
    %987 = vmatpush2.msra.mxu0 0.0
    %988 = vmatprep.subr.mxu0 0.0
    %989 = vmatpush2.msra.mxu0 0.0
    %990 = vmatprep.subr.mxu0 0.0
    %991 = vmatpush2.msra.mxu0 0.0
    %992 = vmatprep.subr.mxu0 0.0
    %993 = vmatpush2.msra.mxu0 0.0
    %994 = vmatprep.subr.mxu0 0.0
    %995 = vmatpush2.msra.mxu0 0.0
    %996 = vmatprep.subr.mxu0 0.0
    %997 = vmatpush2.msra.mxu0 0.0
    %998 = vmatprep.subr.mxu0 0.0
    %999 = vmatpush2.msra.mxu0 0.0
    %1000 = vmatprep.subr.mxu0 0.0
    %1001 = vmatpush2.msra.mxu0 0.0
    %1002 = vmatprep.subr.mxu0 0.0
    %1003 = vmatpush2.msra.mxu0 0.0
    %1004 = vmatprep.subr.mxu0 0.0
    %1005 = vmatpush2.msra.mxu0 0.0
    %1006 = vmatprep.subr.mxu0 0.0
    %1007 = vmatpush2.msra.mxu0 0.0
    %1008 = vmatprep.subr.mxu0 0.0
    %1009 = vmatpush2.msra.mxu0 0.0
    %1010 = vmatprep.subr.mxu0 0.0
    %1011 = vmatpush2.msra.mxu0 0.0
    %1012 = vmatprep.subr.mxu0 0.0
    %1013 = vmatpush2.msra.mxu0 0.0
    %1014 = vmatprep.subr.mxu0 0.0
    %1015 = vmatpush2.msra.mxu0 0.0
    %1016 = vmatprep.mubr.f32.mxu0 0.0
    %1017 = vmatmul.mubr.f32.gmra.mxu0 %v929
    %v1018 = vpop.f32.mrf.mxu0
    %v1019 = vadd.f32 0.0, %v1018
    %v1020 = vpop.f32.mrf.mxu0
    %v1021 = vadd.f32 0.0, %v1020
    %1022 = vmatprep.mubr.f32.mxu0 0.0
    %1023 = vmatmul.mubr.f32.gmra.mxu0 %v932
    %v1024 = vpop.f32.mrf.mxu0
    %v1025 = vadd.f32 0.0, %v1024
    %v1026 = vpop.f32.mrf.mxu0
    %v1027 = vadd.f32 0.0, %v1026
    %1028 = vmatprep.mubr.f32.mxu0 0.0
    %1029 = vmatmul.mubr.f32.gmra.mxu0 %v935
    %v1030 = vpop.f32.mrf.mxu0
    %v1031 = vadd.f32 0.0, %v1030
    %v1032 = vpop.f32.mrf.mxu0
    %v1033 = vadd.f32 0.0, %v1032
    %1034 = vmatprep.mubr.f32.mxu0 0.0
    %1035 = vmatmul.mubr.f32.gmra.mxu0 %v938
    %v1036 = vpop.f32.mrf.mxu0
    %v1037 = vadd.f32 0.0, %v1036
    %v1038 = vpop.f32.mrf.mxu0
    %v1039 = vadd.f32 0.0, %v1038
    %1040 = vmatprep.mubr.f32.mxu0 0.0
    %1041 = vmatmul.mubr.f32.gmra.mxu0 %v941
    %v1042 = vpop.f32.mrf.mxu0
    %v1043 = vadd.f32 0.0, %v1042
    %v1044 = vpop.f32.mrf.mxu0
    %v1045 = vadd.f32 0.0, %v1044
    %1046 = vmatprep.mubr.f32.mxu0 0.0
    %1047 = vmatmul.mubr.f32.gmra.mxu0 %v944
    %v1048 = vpop.f32.mrf.mxu0
    %v1049 = vadd.f32 0.0, %v1048
    %v1050 = vpop.f32.mrf.mxu0
    %v1051 = vadd.f32 0.0, %v1050
    %1052 = vmatprep.mubr.f32.mxu0 0.0
    %1053 = vmatmul.mubr.f32.gmra.mxu0 %v947
    %v1054 = vpop.f32.mrf.mxu0
    %v1055 = vadd.f32 0.0, %v1054
    %v1056 = vpop.f32.mrf.mxu0
    %v1057 = vadd.f32 0.0, %v1056
    %1058 = vmatprep.mubr.f32.mxu0 0.0
    %1059 = vmatmul.mubr.f32.gmra.mxu0 %v950
    %v1060 = vpop.f32.mrf.mxu0
    %v1061 = vadd.f32 0.0, %v1060
    %v1062 = vpop.f32.mrf.mxu0
    %v1063 = vadd.f32 0.0, %v1062
    %1064 = vdwg.mxu0
    %v1066 = vsel %vm927, %v678, 0
    %v1069 = vsel %vm927, %v679, 0
    %v1072 = vsel %vm927, %v680, 0
    %v1075 = vsel %vm927, %v681, 0
    %v1078 = vsel %vm927, %v682, 0
    %v1081 = vsel %vm927, %v683, 0
    %v1084 = vsel %vm927, %v684, 0
    %v1087 = vsel %vm927, %v685, 0
    %1089 = vmatprep.subr.mxu0 0.0
    %1090 = vmatpush1.msra.mxu0 0.0
    %1091 = vmatprep.subr.mxu0 0.0
    %1092 = vmatpush1.msra.mxu0 0.0
    %1093 = vmatprep.subr.mxu0 0.0
    %1094 = vmatpush1.msra.mxu0 0.0
    %1095 = vmatprep.subr.mxu0 0.0
    %1096 = vmatpush1.msra.mxu0 0.0
    %1097 = vmatprep.subr.mxu0 0.0
    %1098 = vmatpush1.msra.mxu0 0.0
    %1099 = vmatprep.subr.mxu0 0.0
    %1100 = vmatpush1.msra.mxu0 0.0
    %1101 = vmatprep.subr.mxu0 0.0
    %1102 = vmatpush1.msra.mxu0 0.0
    %1103 = vmatprep.subr.mxu0 0.0
    %1104 = vmatpush1.msra.mxu0 0.0
    %1105 = vmatprep.subr.mxu0 0.0
    %1106 = vmatpush1.msra.mxu0 0.0
    %1107 = vmatprep.subr.mxu0 0.0
    %1108 = vmatpush1.msra.mxu0 0.0
    %1109 = vmatprep.subr.mxu0 0.0
    %1110 = vmatpush1.msra.mxu0 0.0
    %1111 = vmatprep.subr.mxu0 0.0
    %1112 = vmatpush1.msra.mxu0 0.0
    %1113 = vmatprep.subr.mxu0 0.0
    %1114 = vmatpush1.msra.mxu0 0.0
    %1115 = vmatprep.subr.mxu0 0.0
    %1116 = vmatpush1.msra.mxu0 0.0
    %1117 = vmatprep.subr.mxu0 0.0
    %1118 = vmatpush1.msra.mxu0 0.0
    %1119 = vmatprep.subr.mxu0 %v713
    %1120 = vmatpush1.msra.mxu0 %v712
    %1121 = vmatprep.subr.mxu0 0.0
    %1122 = vmatpush2.msra.mxu0 0.0
    %1123 = vmatprep.subr.mxu0 0.0
    %1124 = vmatpush2.msra.mxu0 0.0
    %1125 = vmatprep.subr.mxu0 0.0
    %1126 = vmatpush2.msra.mxu0 0.0
    %1127 = vmatprep.subr.mxu0 0.0
    %1128 = vmatpush2.msra.mxu0 0.0
    %1129 = vmatprep.subr.mxu0 0.0
    %1130 = vmatpush2.msra.mxu0 0.0
    %1131 = vmatprep.subr.mxu0 0.0
    %1132 = vmatpush2.msra.mxu0 0.0
    %1133 = vmatprep.subr.mxu0 0.0
    %1134 = vmatpush2.msra.mxu0 0.0
    %1135 = vmatprep.subr.mxu0 0.0
    %1136 = vmatpush2.msra.mxu0 0.0
    %1137 = vmatprep.subr.mxu0 0.0
    %1138 = vmatpush2.msra.mxu0 0.0
    %1139 = vmatprep.subr.mxu0 0.0
    %1140 = vmatpush2.msra.mxu0 0.0
    %1141 = vmatprep.subr.mxu0 0.0
    %1142 = vmatpush2.msra.mxu0 0.0
    %1143 = vmatprep.subr.mxu0 0.0
    %1144 = vmatpush2.msra.mxu0 0.0
    %1145 = vmatprep.subr.mxu0 0.0
    %1146 = vmatpush2.msra.mxu0 0.0
    %1147 = vmatprep.subr.mxu0 0.0
    %1148 = vmatpush2.msra.mxu0 0.0
    %1149 = vmatprep.subr.mxu0 0.0
    %1150 = vmatpush2.msra.mxu0 0.0
    %1151 = vmatprep.subr.mxu0 0.0
    %1152 = vmatpush2.msra.mxu0 0.0
    %1153 = vmatprep.mubr.f32.mxu0 0.0
    %1154 = vmatmul.mubr.f32.gmra.mxu0 %v1066
    %v1155 = vpop.f32.mrf.mxu0
    %v1156 = vadd.f32 %v1019, %v1155
    %v1157 = vpop.f32.mrf.mxu0
    %v1158 = vadd.f32 %v1021, %v1157
    %1159 = vmatprep.mubr.f32.mxu0 0.0
    %1160 = vmatmul.mubr.f32.gmra.mxu0 %v1069
    %v1161 = vpop.f32.mrf.mxu0
    %v1162 = vadd.f32 %v1025, %v1161
    %v1163 = vpop.f32.mrf.mxu0
    %v1164 = vadd.f32 %v1027, %v1163
    %1165 = vmatprep.mubr.f32.mxu0 0.0
    %1166 = vmatmul.mubr.f32.gmra.mxu0 %v1072
    %v1167 = vpop.f32.mrf.mxu0
    %v1168 = vadd.f32 %v1031, %v1167
    %v1169 = vpop.f32.mrf.mxu0
    %v1170 = vadd.f32 %v1033, %v1169
    %1171 = vmatprep.mubr.f32.mxu0 0.0
    %1172 = vmatmul.mubr.f32.gmra.mxu0 %v1075
    %v1173 = vpop.f32.mrf.mxu0
    %v1174 = vadd.f32 %v1037, %v1173
    %v1175 = vpop.f32.mrf.mxu0
    %v1176 = vadd.f32 %v1039, %v1175
    %1177 = vmatprep.mubr.f32.mxu0 0.0
    %1178 = vmatmul.mubr.f32.gmra.mxu0 %v1078
    %v1179 = vpop.f32.mrf.mxu0
    %v1180 = vadd.f32 %v1043, %v1179
    %v1181 = vpop.f32.mrf.mxu0
    %v1182 = vadd.f32 %v1045, %v1181
    %1183 = vmatprep.mubr.f32.mxu0 0.0
    %1184 = vmatmul.mubr.f32.gmra.mxu0 %v1081
    %v1185 = vpop.f32.mrf.mxu0
    %v1186 = vadd.f32 %v1049, %v1185
    %v1187 = vpop.f32.mrf.mxu0
    %v1188 = vadd.f32 %v1051, %v1187
    %1189 = vmatprep.mubr.f32.mxu0 0.0
    %1190 = vmatmul.mubr.f32.gmra.mxu0 %v1084
    %v1191 = vpop.f32.mrf.mxu0
    %v1192 = vadd.f32 %v1055, %v1191
    %v1193 = vpop.f32.mrf.mxu0
    %v1194 = vadd.f32 %v1057, %v1193
    %1195 = vmatprep.mubr.f32.mxu0 0.0
    %1196 = vmatmul.mubr.f32.gmra.mxu0 %v1087
    %v1197 = vpop.f32.mrf.mxu0
    %v1198 = vadd.f32 %v1061, %v1197
    %v1199 = vpop.f32.mrf.mxu0
    %v1200 = vadd.f32 %v1063, %v1199
    %1201 = vdwg.mxu0
    %v1203 = vsel %vm927, %v694, 0
    %v1206 = vsel %vm927, %v695, 0
    %v1209 = vsel %vm927, %v696, 0
    %v1212 = vsel %vm927, %v697, 0
    %v1215 = vsel %vm927, %v698, 0
    %v1218 = vsel %vm927, %v699, 0
    %v1221 = vsel %vm927, %v700, 0
    %v1224 = vsel %vm927, %v701, 0
    %1226 = vmatprep.subr.mxu0 0.0
    %1227 = vmatpush1.msra.mxu0 0.0
    %1228 = vmatprep.subr.mxu0 0.0
    %1229 = vmatpush1.msra.mxu0 0.0
    %1230 = vmatprep.subr.mxu0 0.0
    %1231 = vmatpush1.msra.mxu0 0.0
    %1232 = vmatprep.subr.mxu0 0.0
    %1233 = vmatpush1.msra.mxu0 0.0
    %1234 = vmatprep.subr.mxu0 0.0
    %1235 = vmatpush1.msra.mxu0 0.0
    %1236 = vmatprep.subr.mxu0 0.0
    %1237 = vmatpush1.msra.mxu0 0.0
    %1238 = vmatprep.subr.mxu0 0.0
    %1239 = vmatpush1.msra.mxu0 0.0
    %1240 = vmatprep.subr.mxu0 0.0
    %1241 = vmatpush1.msra.mxu0 0.0
    %1242 = vmatprep.subr.mxu0 0.0
    %1243 = vmatpush1.msra.mxu0 0.0
    %1244 = vmatprep.subr.mxu0 0.0
    %1245 = vmatpush1.msra.mxu0 0.0
    %1246 = vmatprep.subr.mxu0 0.0
    %1247 = vmatpush1.msra.mxu0 0.0
    %1248 = vmatprep.subr.mxu0 0.0
    %1249 = vmatpush1.msra.mxu0 0.0
    %1250 = vmatprep.subr.mxu0 0.0
    %1251 = vmatpush1.msra.mxu0 0.0
    %1252 = vmatprep.subr.mxu0 0.0
    %1253 = vmatpush1.msra.mxu0 0.0
    %1254 = vmatprep.subr.mxu0 0.0
    %1255 = vmatpush1.msra.mxu0 0.0
    %1256 = vmatprep.subr.mxu0 %v854
    %1257 = vmatpush1.msra.mxu0 %v852
    %1258 = vmatprep.subr.mxu0 0.0
    %1259 = vmatpush2.msra.mxu0 0.0
    %1260 = vmatprep.subr.mxu0 0.0
    %1261 = vmatpush2.msra.mxu0 0.0
    %1262 = vmatprep.subr.mxu0 0.0
    %1263 = vmatpush2.msra.mxu0 0.0
    %1264 = vmatprep.subr.mxu0 0.0
    %1265 = vmatpush2.msra.mxu0 0.0
    %1266 = vmatprep.subr.mxu0 0.0
    %1267 = vmatpush2.msra.mxu0 0.0
    %1268 = vmatprep.subr.mxu0 0.0
    %1269 = vmatpush2.msra.mxu0 0.0
    %1270 = vmatprep.subr.mxu0 0.0
    %1271 = vmatpush2.msra.mxu0 0.0
    %1272 = vmatprep.subr.mxu0 0.0
    %1273 = vmatpush2.msra.mxu0 0.0
    %1274 = vmatprep.subr.mxu0 0.0
    %1275 = vmatpush2.msra.mxu0 0.0
    %1276 = vmatprep.subr.mxu0 0.0
    %1277 = vmatpush2.msra.mxu0 0.0
    %1278 = vmatprep.subr.mxu0 0.0
    %1279 = vmatpush2.msra.mxu0 0.0
    %1280 = vmatprep.subr.mxu0 0.0
    %1281 = vmatpush2.msra.mxu0 0.0
    %1282 = vmatprep.subr.mxu0 0.0
    %1283 = vmatpush2.msra.mxu0 0.0
    %1284 = vmatprep.subr.mxu0 0.0
    %1285 = vmatpush2.msra.mxu0 0.0
    %1286 = vmatprep.subr.mxu0 0.0
    %1287 = vmatpush2.msra.mxu0 0.0
    %1288 = vmatprep.subr.mxu0 0.0
    %1289 = vmatpush2.msra.mxu0 0.0
    %1290 = vmatprep.mubr.f32.mxu0 0.0
    %1291 = vmatmul.mubr.f32.gmra.mxu0 %v1203
    %v1292 = vpop.f32.mrf.mxu0
    %v1293 = vadd.f32 0.0, %v1292
    %v1294 = vpop.f32.mrf.mxu0
    %v1295 = vadd.f32 0.0, %v1294
    %1296 = vmatprep.mubr.f32.mxu0 0.0
    %1297 = vmatmul.mubr.f32.gmra.mxu0 %v1206
    %v1298 = vpop.f32.mrf.mxu0
    %v1299 = vadd.f32 0.0, %v1298
    %v1300 = vpop.f32.mrf.mxu0
    %v1301 = vadd.f32 0.0, %v1300
    %1302 = vmatprep.mubr.f32.mxu0 0.0
    %1303 = vmatmul.mubr.f32.gmra.mxu0 %v1209
    %v1304 = vpop.f32.mrf.mxu0
    %v1305 = vadd.f32 0.0, %v1304
    %v1306 = vpop.f32.mrf.mxu0
    %v1307 = vadd.f32 0.0, %v1306
    %1308 = vmatprep.mubr.f32.mxu0 0.0
    %1309 = vmatmul.mubr.f32.gmra.mxu0 %v1212
    %v1310 = vpop.f32.mrf.mxu0
    %v1311 = vadd.f32 0.0, %v1310
    %v1312 = vpop.f32.mrf.mxu0
    %v1313 = vadd.f32 0.0, %v1312
    %1314 = vmatprep.mubr.f32.mxu0 0.0
    %1315 = vmatmul.mubr.f32.gmra.mxu0 %v1215
    %v1316 = vpop.f32.mrf.mxu0
    %v1317 = vadd.f32 0.0, %v1316
    %v1318 = vpop.f32.mrf.mxu0
    %v1319 = vadd.f32 0.0, %v1318
    %1320 = vmatprep.mubr.f32.mxu0 0.0
    %1321 = vmatmul.mubr.f32.gmra.mxu0 %v1218
    %v1322 = vpop.f32.mrf.mxu0
    %v1323 = vadd.f32 0.0, %v1322
    %v1324 = vpop.f32.mrf.mxu0
    %v1325 = vadd.f32 0.0, %v1324
    %1326 = vmatprep.mubr.f32.mxu0 0.0
    %1327 = vmatmul.mubr.f32.gmra.mxu0 %v1221
    %v1328 = vpop.f32.mrf.mxu0
    %v1329 = vadd.f32 0.0, %v1328
    %v1330 = vpop.f32.mrf.mxu0
    %v1331 = vadd.f32 0.0, %v1330
    %1332 = vmatprep.mubr.f32.mxu0 0.0
    %1333 = vmatmul.mubr.f32.gmra.mxu0 %v1224
    %v1334 = vpop.f32.mrf.mxu0
    %v1335 = vadd.f32 0.0, %v1334
    %v1336 = vpop.f32.mrf.mxu0
    %v1337 = vadd.f32 0.0, %v1336
    %1338 = vdwg.mxu0
    %v1339 = vadd.f32 %v1156, %v1293
    %v1340 = vadd.f32 %v1158, %v1295
    %v1341 = vadd.f32 %v1162, %v1299
    %v1342 = vadd.f32 %v1164, %v1301
    %v1343 = vadd.f32 %v1168, %v1305
    %v1344 = vadd.f32 %v1170, %v1307
    %v1345 = vadd.f32 %v1174, %v1311
    %v1346 = vadd.f32 %v1176, %v1313
    %v1347 = vadd.f32 %v1180, %v1317
    %v1348 = vadd.f32 %v1182, %v1319
    %v1349 = vadd.f32 %v1186, %v1323
    %v1350 = vadd.f32 %v1188, %v1325
    %v1351 = vadd.f32 %v1192, %v1329
    %v1352 = vadd.f32 %v1194, %v1331
    %v1353 = vadd.f32 %v1198, %v1335
    %v1354 = vadd.f32 %v1200, %v1337
    %v1356 = vsel %vm927, %v702, 0
    %v1359 = vsel %vm927, %v703, 0
    %v1362 = vsel %vm927, %v704, 0
    %v1365 = vsel %vm927, %v705, 0
    %v1368 = vsel %vm927, %v706, 0
    %v1371 = vsel %vm927, %v707, 0
    %v1374 = vsel %vm927, %v708, 0
    %v1377 = vsel %vm927, %v709, 0
    %1379 = vmatprep.subr.mxu0 0.0
    %1380 = vmatpush1.msra.mxu0 0.0
    %1381 = vmatprep.subr.mxu0 0.0
    %1382 = vmatpush1.msra.mxu0 0.0
    %1383 = vmatprep.subr.mxu0 0.0
    %1384 = vmatpush1.msra.mxu0 0.0
    %1385 = vmatprep.subr.mxu0 0.0
    %1386 = vmatpush1.msra.mxu0 0.0
    %1387 = vmatprep.subr.mxu0 0.0
    %1388 = vmatpush1.msra.mxu0 0.0
    %1389 = vmatprep.subr.mxu0 0.0
    %1390 = vmatpush1.msra.mxu0 0.0
    %1391 = vmatprep.subr.mxu0 0.0
    %1392 = vmatpush1.msra.mxu0 0.0
    %1393 = vmatprep.subr.mxu0 0.0
    %1394 = vmatpush1.msra.mxu0 0.0
    %1395 = vmatprep.subr.mxu0 0.0
    %1396 = vmatpush1.msra.mxu0 0.0
    %1397 = vmatprep.subr.mxu0 0.0
    %1398 = vmatpush1.msra.mxu0 0.0
    %1399 = vmatprep.subr.mxu0 0.0
    %1400 = vmatpush1.msra.mxu0 0.0
    %1401 = vmatprep.subr.mxu0 0.0
    %1402 = vmatpush1.msra.mxu0 0.0
    %1403 = vmatprep.subr.mxu0 0.0
    %1404 = vmatpush1.msra.mxu0 0.0
    %1405 = vmatprep.subr.mxu0 0.0
    %1406 = vmatpush1.msra.mxu0 0.0
    %1407 = vmatprep.subr.mxu0 0.0
    %1408 = vmatpush1.msra.mxu0 0.0
    %1409 = vmatprep.subr.mxu0 %v925
    %1410 = vmatpush1.msra.mxu0 %v923
    %1411 = vmatprep.subr.mxu0 0.0
    %1412 = vmatpush2.msra.mxu0 0.0
    %1413 = vmatprep.subr.mxu0 0.0
    %1414 = vmatpush2.msra.mxu0 0.0
    %1415 = vmatprep.subr.mxu0 0.0
    %1416 = vmatpush2.msra.mxu0 0.0
    %1417 = vmatprep.subr.mxu0 0.0
    %1418 = vmatpush2.msra.mxu0 0.0
    %1419 = vmatprep.subr.mxu0 0.0
    %1420 = vmatpush2.msra.mxu0 0.0
    %1421 = vmatprep.subr.mxu0 0.0
    %1422 = vmatpush2.msra.mxu0 0.0
    %1423 = vmatprep.subr.mxu0 0.0
    %1424 = vmatpush2.msra.mxu0 0.0
    %1425 = vmatprep.subr.mxu0 0.0
    %1426 = vmatpush2.msra.mxu0 0.0
    %1427 = vmatprep.subr.mxu0 0.0
    %1428 = vmatpush2.msra.mxu0 0.0
    %1429 = vmatprep.subr.mxu0 0.0
    %1430 = vmatpush2.msra.mxu0 0.0
    %1431 = vmatprep.subr.mxu0 0.0
    %1432 = vmatpush2.msra.mxu0 0.0
    %1433 = vmatprep.subr.mxu0 0.0
    %1434 = vmatpush2.msra.mxu0 0.0
    %1435 = vmatprep.subr.mxu0 0.0
    %1436 = vmatpush2.msra.mxu0 0.0
    %1437 = vmatprep.subr.mxu0 0.0
    %1438 = vmatpush2.msra.mxu0 0.0
    %1439 = vmatprep.subr.mxu0 0.0
    %1440 = vmatpush2.msra.mxu0 0.0
    %1441 = vmatprep.subr.mxu0 0.0
    %1442 = vmatpush2.msra.mxu0 0.0
    %1443 = vmatprep.mubr.f32.mxu0 0.0
    %1444 = vmatmul.mubr.f32.gmra.mxu0 %v1356
    %v1445 = vpop.f32.mrf.mxu0
    %v1446 = vadd.f32 0.0, %v1445
    %v1447 = vpop.f32.mrf.mxu0
    %v1448 = vadd.f32 0.0, %v1447
    %1449 = vmatprep.mubr.f32.mxu0 0.0
    %1450 = vmatmul.mubr.f32.gmra.mxu0 %v1359
    %v1451 = vpop.f32.mrf.mxu0
    %v1452 = vadd.f32 0.0, %v1451
    %v1453 = vpop.f32.mrf.mxu0
    %v1454 = vadd.f32 0.0, %v1453
    %1455 = vmatprep.mubr.f32.mxu0 0.0
    %1456 = vmatmul.mubr.f32.gmra.mxu0 %v1362
    %v1457 = vpop.f32.mrf.mxu0
    %v1458 = vadd.f32 0.0, %v1457
    %v1459 = vpop.f32.mrf.mxu0
    %v1460 = vadd.f32 0.0, %v1459
    %1461 = vmatprep.mubr.f32.mxu0 0.0
    %1462 = vmatmul.mubr.f32.gmra.mxu0 %v1365
    %v1463 = vpop.f32.mrf.mxu0
    %v1464 = vadd.f32 0.0, %v1463
    %v1465 = vpop.f32.mrf.mxu0
    %v1466 = vadd.f32 0.0, %v1465
    %1467 = vmatprep.mubr.f32.mxu0 0.0
    %1468 = vmatmul.mubr.f32.gmra.mxu0 %v1368
    %v1469 = vpop.f32.mrf.mxu0
    %v1470 = vadd.f32 0.0, %v1469
    %v1471 = vpop.f32.mrf.mxu0
    %v1472 = vadd.f32 0.0, %v1471
    %1473 = vmatprep.mubr.f32.mxu0 0.0
    %1474 = vmatmul.mubr.f32.gmra.mxu0 %v1371
    %v1475 = vpop.f32.mrf.mxu0
    %v1476 = vadd.f32 0.0, %v1475
    %v1477 = vpop.f32.mrf.mxu0
    %v1478 = vadd.f32 0.0, %v1477
    %1479 = vmatprep.mubr.f32.mxu0 0.0
    %1480 = vmatmul.mubr.f32.gmra.mxu0 %v1374
    %v1481 = vpop.f32.mrf.mxu0
    %v1482 = vadd.f32 0.0, %v1481
    %v1483 = vpop.f32.mrf.mxu0
    %v1484 = vadd.f32 0.0, %v1483
    %1485 = vmatprep.mubr.f32.mxu0 0.0
    %1486 = vmatmul.mubr.f32.gmra.mxu0 %v1377
    %v1487 = vpop.f32.mrf.mxu0
    %v1488 = vadd.f32 0.0, %v1487
    %v1489 = vpop.f32.mrf.mxu0
    %v1490 = vadd.f32 0.0, %v1489
    %1491 = vdwg.mxu0
    %v1492 = vadd.f32 %v1339, %v1446
    %v1493 = vadd.f32 %v1340, %v1448
    %v1494 = vadd.f32 %v1341, %v1452
    %v1495 = vadd.f32 %v1342, %v1454
    %v1496 = vadd.f32 %v1343, %v1458
    %v1497 = vadd.f32 %v1344, %v1460
    %v1498 = vadd.f32 %v1345, %v1464
    %v1499 = vadd.f32 %v1346, %v1466
    %v1500 = vadd.f32 %v1347, %v1470
    %v1501 = vadd.f32 %v1348, %v1472
    %v1502 = vadd.f32 %v1349, %v1476
    %v1503 = vadd.f32 %v1350, %v1478
    %v1504 = vadd.f32 %v1351, %v1482
    %v1505 = vadd.f32 %v1352, %v1484
    %v1506 = vadd.f32 %v1353, %v1488
    %v1507 = vadd.f32 %v1354, %v1490
    %v1508 = vmin.f32 %v1492, %v1494
    %v1509 = vrot.slane %v1508, 4
    %v1510 = vmin.f32 %v1508, %v1509
    %v1511 = vrot.slane %v1510, 2
    %v1512 = vmin.f32 %v1510, %v1511
    %v1513 = vrot.slane %v1512, 1
    %v1514 = vmin.f32 %v1512, %v1513
    %v1515 = vmin.f32 %v1493, %v1495
    %v1516 = vrot.slane %v1515, 4
    %v1517 = vmin.f32 %v1515, %v1516
    %v1518 = vrot.slane %v1517, 2
    %v1519 = vmin.f32 %v1517, %v1518
    %v1520 = vrot.slane %v1519, 1
    %v1521 = vmin.f32 %v1519, %v1520
    %v1522 = vmin.f32 %v1496, %v1498
    %v1523 = vrot.slane %v1522, 4
    %v1524 = vmin.f32 %v1522, %v1523
    %v1525 = vrot.slane %v1524, 2
    %v1526 = vmin.f32 %v1524, %v1525
    %v1527 = vrot.slane %v1526, 1
    %v1528 = vmin.f32 %v1526, %v1527
    %v1529 = vmin.f32 %v1497, %v1499
    %v1530 = vrot.slane %v1529, 4
    %v1531 = vmin.f32 %v1529, %v1530
    %v1532 = vrot.slane %v1531, 2
    %v1533 = vmin.f32 %v1531, %v1532
    %v1534 = vrot.slane %v1533, 1
    %v1535 = vmin.f32 %v1533, %v1534
    %v1536 = vmin.f32 %v1500, %v1502
    %v1537 = vrot.slane %v1536, 4
    %v1538 = vmin.f32 %v1536, %v1537
    %v1539 = vrot.slane %v1538, 2
    %v1540 = vmin.f32 %v1538, %v1539
    %v1541 = vrot.slane %v1540, 1
    %v1542 = vmin.f32 %v1540, %v1541
    %v1543 = vmin.f32 %v1501, %v1503
    %v1544 = vrot.slane %v1543, 4
    %v1545 = vmin.f32 %v1543, %v1544
    %v1546 = vrot.slane %v1545, 2
    %v1547 = vmin.f32 %v1545, %v1546
    %v1548 = vrot.slane %v1547, 1
    %v1549 = vmin.f32 %v1547, %v1548
    %v1550 = vmin.f32 %v1504, %v1506
    %v1551 = vrot.slane %v1550, 4
    %v1552 = vmin.f32 %v1550, %v1551
    %v1553 = vrot.slane %v1552, 2
    %v1554 = vmin.f32 %v1552, %v1553
    %v1555 = vrot.slane %v1554, 1
    %v1556 = vmin.f32 %v1554, %v1555
    %v1557 = vmin.f32 %v1505, %v1507
    %v1558 = vrot.slane %v1557, 4
    %v1559 = vmin.f32 %v1557, %v1558
    %v1560 = vrot.slane %v1559, 2
    %v1561 = vmin.f32 %v1559, %v1560
    %v1562 = vrot.slane %v1561, 1
    %v1563 = vmin.f32 %v1561, %v1562
    %v1564 = vadd.f32 %v1514, %v1542
    %v1565 = vadd.f32 %v1521, %v1549
    %v1566 = vadd.f32 %v1528, %v1556
    %v1567 = vadd.f32 %v1535, %v1563
    %1568 = vmatprep.subr.mxu0 0.0
    %1569 = vmatpush1.msra.mxu0 %v661
    %1570 = vmatprep.subr.mxu0 0.0
    %1571 = vmatpush1.msra.mxu0 %v660
    %1572 = vmatprep.subr.mxu0 0.0
    %1573 = vmatpush1.msra.mxu0 %v659
    %1574 = vmatprep.subr.mxu0 0.0
    %1575 = vmatpush1.msra.mxu0 %v658
    %1576 = vmatprep.subr.mxu0 0.0
    %1577 = vmatpush1.msra.mxu0 %v657
    %1578 = vmatprep.subr.mxu0 0.0
    %1579 = vmatpush1.msra.mxu0 %v656
    %1580 = vmatprep.subr.mxu0 0.0
    %1581 = vmatpush1.msra.mxu0 %v655
    %1582 = vmatprep.subr.mxu0 0.0
    %1583 = vmatpush1.msra.mxu0 %v654
    %1584 = vmatprep.subr.mxu0 0.0
    %1585 = vmatpush1.msra.mxu0 %v653
    %1586 = vmatprep.subr.mxu0 0.0
    %1587 = vmatpush1.msra.mxu0 %v652
    %1588 = vmatprep.subr.mxu0 0.0
    %1589 = vmatpush1.msra.mxu0 %v651
    %1590 = vmatprep.subr.mxu0 0.0
    %1591 = vmatpush1.msra.mxu0 %v650
    %1592 = vmatprep.subr.mxu0 0.0
    %1593 = vmatpush1.msra.mxu0 %v649
    %1594 = vmatprep.subr.mxu0 0.0
    %1595 = vmatpush1.msra.mxu0 %v648
    %1596 = vmatprep.subr.mxu0 0.0
    %1597 = vmatpush1.msra.mxu0 %v647
    %1598 = vmatprep.subr.mxu0 0.0
    %1599 = vmatpush1.msra.mxu0 %v646
    %1600 = vmatprep.subr.mxu0 0.0
    %1601 = vmatpush2.msra.mxu0 %v677
    %1602 = vmatprep.subr.mxu0 0.0
    %1603 = vmatpush2.msra.mxu0 %v676
    %1604 = vmatprep.subr.mxu0 0.0
    %1605 = vmatpush2.msra.mxu0 %v675
    %1606 = vmatprep.subr.mxu0 0.0
    %1607 = vmatpush2.msra.mxu0 %v674
    %1608 = vmatprep.subr.mxu0 0.0
    %1609 = vmatpush2.msra.mxu0 %v673
    %1610 = vmatprep.subr.mxu0 0.0
    %1611 = vmatpush2.msra.mxu0 %v672
    %1612 = vmatprep.subr.mxu0 0.0
    %1613 = vmatpush2.msra.mxu0 %v671
    %1614 = vmatprep.subr.mxu0 0.0
    %1615 = vmatpush2.msra.mxu0 %v670
    %1616 = vmatprep.subr.mxu0 0.0
    %1617 = vmatpush2.msra.mxu0 %v669
    %1618 = vmatprep.subr.mxu0 0.0
    %1619 = vmatpush2.msra.mxu0 %v668
    %1620 = vmatprep.subr.mxu0 0.0
    %1621 = vmatpush2.msra.mxu0 %v667
    %1622 = vmatprep.subr.mxu0 0.0
    %1623 = vmatpush2.msra.mxu0 %v666
    %1624 = vmatprep.subr.mxu0 0.0
    %1625 = vmatpush2.msra.mxu0 %v665
    %1626 = vmatprep.subr.mxu0 0.0
    %1627 = vmatpush2.msra.mxu0 %v664
    %1628 = vmatprep.subr.mxu0 0.0
    %1629 = vmatpush2.msra.mxu0 %v663
    %1630 = vmatprep.subr.mxu0 0.0
    %1631 = vmatpush2.msra.mxu0 %v662
    %1632 = vmatprep.mubr.f32.mxu0 %v1567
    %1633 = vmatmul.mubr.f32.gmra.mxu0 %v1566
    %v1634 = vpop.f32.mrf.mxu0
    %v1635 = vadd.f32 0.0, %v1634
    %v1636 = vpop.f32.mrf.mxu0
    %1637 = vdwg.mxu0
    %1638 = vmatprep.subr.mxu0 0.0
    %1639 = vmatpush1.msra.mxu0 %v565
    %1640 = vmatprep.subr.mxu0 0.0
    %1641 = vmatpush1.msra.mxu0 %v564
    %1642 = vmatprep.subr.mxu0 0.0
    %1643 = vmatpush1.msra.mxu0 %v563
    %1644 = vmatprep.subr.mxu0 0.0
    %1645 = vmatpush1.msra.mxu0 %v562
    %1646 = vmatprep.subr.mxu0 0.0
    %1647 = vmatpush1.msra.mxu0 %v561
    %1648 = vmatprep.subr.mxu0 0.0
    %1649 = vmatpush1.msra.mxu0 %v560
    %1650 = vmatprep.subr.mxu0 0.0
    %1651 = vmatpush1.msra.mxu0 %v559
    %1652 = vmatprep.subr.mxu0 0.0
    %1653 = vmatpush1.msra.mxu0 %v558
    %1654 = vmatprep.subr.mxu0 0.0
    %1655 = vmatpush1.msra.mxu0 %v557
    %1656 = vmatprep.subr.mxu0 0.0
    %1657 = vmatpush1.msra.mxu0 %v556
    %1658 = vmatprep.subr.mxu0 0.0
    %1659 = vmatpush1.msra.mxu0 %v555
    %1660 = vmatprep.subr.mxu0 0.0
    %1661 = vmatpush1.msra.mxu0 %v554
    %1662 = vmatprep.subr.mxu0 0.0
    %1663 = vmatpush1.msra.mxu0 %v553
    %1664 = vmatprep.subr.mxu0 0.0
    %1665 = vmatpush1.msra.mxu0 %v552
    %1666 = vmatprep.subr.mxu0 0.0
    %1667 = vmatpush1.msra.mxu0 %v551
    %1668 = vmatprep.subr.mxu0 0.0
    %1669 = vmatpush1.msra.mxu0 %v550
    %1670 = vmatprep.subr.mxu0 0.0
    %1671 = vmatpush2.msra.mxu0 %v581
    %1672 = vmatprep.subr.mxu0 0.0
    %1673 = vmatpush2.msra.mxu0 %v580
    %1674 = vmatprep.subr.mxu0 0.0
    %1675 = vmatpush2.msra.mxu0 %v579
    %1676 = vmatprep.subr.mxu0 0.0
    %1677 = vmatpush2.msra.mxu0 %v578
    %1678 = vmatprep.subr.mxu0 0.0
    %1679 = vmatpush2.msra.mxu0 %v577
    %1680 = vmatprep.subr.mxu0 0.0
    %1681 = vmatpush2.msra.mxu0 %v576
    %1682 = vmatprep.subr.mxu0 0.0
    %1683 = vmatpush2.msra.mxu0 %v575
    %1684 = vmatprep.subr.mxu0 0.0
    %1685 = vmatpush2.msra.mxu0 %v574
    %1686 = vmatprep.subr.mxu0 0.0
    %1687 = vmatpush2.msra.mxu0 %v573
    %1688 = vmatprep.subr.mxu0 0.0
    %1689 = vmatpush2.msra.mxu0 %v572
    %1690 = vmatprep.subr.mxu0 0.0
    %1691 = vmatpush2.msra.mxu0 %v571
    %1692 = vmatprep.subr.mxu0 0.0
    %1693 = vmatpush2.msra.mxu0 %v570
    %1694 = vmatprep.subr.mxu0 0.0
    %1695 = vmatpush2.msra.mxu0 %v569
    %1696 = vmatprep.subr.mxu0 0.0
    %1697 = vmatpush2.msra.mxu0 %v568
    %1698 = vmatprep.subr.mxu0 0.0
    %1699 = vmatpush2.msra.mxu0 %v567
    %1700 = vmatprep.subr.mxu0 0.0
    %1701 = vmatpush2.msra.mxu0 %v566
    %1702 = vmatprep.mubr.f32.mxu0 %v1565
    %1703 = vmatmul.mubr.f32.gmra.mxu0 %v1564
    %v1704 = vpop.f32.mrf.mxu0
    %v1705 = vadd.f32 %v1635, %v1704
    %v1706 = vpop.f32.mrf.mxu0
    %1707 = vdwg.mxu0
    %v1708 = vmul.f32 %v1705, 0.70710677
    %v1709 = vand.u32 2147483647, %v1708
    %v1710 = vmul.f32 %v1709, 0.3275911
    %v1711 = vadd.f32 %v1710, 1.0
    %v1712 = vrcp.pop %v1711
    %v1713 = vmul.f32 1.0, %v1712
    %v1714 = vmul.f32 %v1713, 1.0614054
    %v1715 = vadd.f32 %v1714, -1.4531521
    %v1716 = vmul.f32 %v1713, %v1715
    %v1717 = vadd.f32 %v1716, 1.4214138
    %v1718 = vmul.f32 %v1713, %v1717
    %v1719 = vadd.f32 %v1718, -0.28449672
    %v1720 = vmul.f32 %v1713, %v1719
    %v1721 = vadd.f32 %v1720, 0.2548296
    %v1722 = vmul.f32 %v1713, %v1721
    %v1723 = vsub.f32 0.0, %v1709
    %v1724 = vmul.f32 %v1723, %v1709
    %v1725 = vmul.f32 %v1724, 1.442695
    %v1726 = vpow.pop %v1725
    %v1727 = vmul.f32 %v1722, %v1726
    %v1728 = vsub.f32 1.0, %v1727
    %vm1729 = vcmp.ge.f32.partialorder %v1708, 0.0
    %v1730 = vsub.f32 0.0, %v1728
    %v1731 = vsel %vm1729, %v1728, %v1730
    %v1732 = vmul.f32 %v1705, 0.5
    %v1733 = vadd.f32 %v1731, 1.0
    %v1734 = vmul.f32 %v1732, %v1733
    %1736 = vset.pattern.permute.xlu0 0
    %1737 = vperm.xlu0 %1736, %v710
    %v1738 = vpop.permute.xlu0 %1737
    %1741 = vset.pattern.permute.xlu0 0
    %1742 = vperm.xlu0 %1741, %v711
    %v1743 = vpop.permute.xlu0 %1742
    %v1745 = vlaneseq
    %v1746 = vshrl.u32 %v1745, 7
    %v1747 = vsub.s32 0, %v1746
    %v1748 = vrot.slane %v1734, %v1747
    %v1749 = vadd.f32 %v1738, %v1748
    %v1750 = vadd.f32 %v1743, %v1748
    %vm1751 = vcmask 261120
    %1752 = vst.msk [vmem:[#allocation2] sm:$0xff] %vm1751, %v1749
    %1753 = vst.msk [vmem:[#allocation2 + $0x8] sm:$0xff] %vm1751, %v1750
    %s1754 = scalar_lea.vmem %s0, 16
    %v1755 = vld [vmem:[%s1754] sm:$0xff]
    %v1756 = vld [vmem:[%s1754 + $0x8] sm:$0xff]
    %1757 = vmatprep.subr.mxu0 %v225
    %1758 = vmatpush1.msra.mxu0 %v224
    %1759 = vmatprep.subr.mxu0 %v223
    %1760 = vmatpush1.msra.mxu0 %v222
    %1761 = vmatprep.subr.mxu0 %v221
    %1762 = vmatpush1.msra.mxu0 %v220
    %1763 = vmatprep.subr.mxu0 %v219
    %1764 = vmatpush1.msra.mxu0 %v218
    %1765 = vmatprep.subr.mxu0 %v217
    %1766 = vmatpush1.msra.mxu0 %v216
    %1767 = vmatprep.subr.mxu0 %v215
    %1768 = vmatpush1.msra.mxu0 %v214
    %1769 = vmatprep.subr.mxu0 %v213
    %1770 = vmatpush1.msra.mxu0 %v212
    %1771 = vmatprep.subr.mxu0 %v211
    %1772 = vmatpush1.msra.mxu0 %v210
    %1773 = vmatprep.subr.mxu0 %v209
    %1774 = vmatpush1.msra.mxu0 %v208
    %1775 = vmatprep.subr.mxu0 %v207
    %1776 = vmatpush1.msra.mxu0 %v206
    %1777 = vmatprep.subr.mxu0 %v205
    %1778 = vmatpush1.msra.mxu0 %v204
    %1779 = vmatprep.subr.mxu0 %v203
    %1780 = vmatpush1.msra.mxu0 %v202
    %1781 = vmatprep.subr.mxu0 %v201
    %1782 = vmatpush1.msra.mxu0 %v200
    %1783 = vmatprep.subr.mxu0 %v199
    %1784 = vmatpush1.msra.mxu0 %v198
    %1785 = vmatprep.subr.mxu0 %v197
    %1786 = vmatpush1.msra.mxu0 %v196
    %1787 = vmatprep.subr.mxu0 %v195
    %1788 = vmatpush1.msra.mxu0 %v194
    %1789 = vmatprep.subr.mxu0 %v257
    %1790 = vmatpush2.msra.mxu0 %v256
    %1791 = vmatprep.subr.mxu0 %v255
    %1792 = vmatpush2.msra.mxu0 %v254
    %1793 = vmatprep.subr.mxu0 %v253
    %1794 = vmatpush2.msra.mxu0 %v252
    %1795 = vmatprep.subr.mxu0 %v251
    %1796 = vmatpush2.msra.mxu0 %v250
    %1797 = vmatprep.subr.mxu0 %v249
    %1798 = vmatpush2.msra.mxu0 %v248
    %1799 = vmatprep.subr.mxu0 %v247
    %1800 = vmatpush2.msra.mxu0 %v246
    %1801 = vmatprep.subr.mxu0 %v245
    %1802 = vmatpush2.msra.mxu0 %v244
    %1803 = vmatprep.subr.mxu0 %v243
    %1804 = vmatpush2.msra.mxu0 %v242
    %1805 = vmatprep.subr.mxu0 %v241
    %1806 = vmatpush2.msra.mxu0 %v240
    %1807 = vmatprep.subr.mxu0 %v239
    %1808 = vmatpush2.msra.mxu0 %v238
    %1809 = vmatprep.subr.mxu0 %v237
    %1810 = vmatpush2.msra.mxu0 %v236
    %1811 = vmatprep.subr.mxu0 %v235
    %1812 = vmatpush2.msra.mxu0 %v234
    %1813 = vmatprep.subr.mxu0 %v233
    %1814 = vmatpush2.msra.mxu0 %v232
    %1815 = vmatprep.subr.mxu0 %v231
    %1816 = vmatpush2.msra.mxu0 %v230
    %1817 = vmatprep.subr.mxu0 %v229
    %1818 = vmatpush2.msra.mxu0 %v228
    %1819 = vmatprep.subr.mxu0 %v227
    %1820 = vmatpush2.msra.mxu0 %v226
    %1821 = vmatprep.mubr.f32.mxu0 %v1756
    %1822 = vmatmul.mubr.f32.gmra.mxu0 %v1755
    %v1823 = vpop.f32.mrf.mxu0
    %v1824 = vadd.f32 0.0, %v1823
    %v1825 = vpop.f32.mrf.mxu0
    %v1826 = vadd.f32 0.0, %v1825
    %1827 = vdwg.mxu0
    %1828 = vmatprep.subr.mxu0 %v421
    %1829 = vmatpush1.msra.mxu0 %v420
    %1830 = vmatprep.subr.mxu0 %v419
    %1831 = vmatpush1.msra.mxu0 %v418
    %1832 = vmatprep.subr.mxu0 %v417
    %1833 = vmatpush1.msra.mxu0 %v416
    %1834 = vmatprep.subr.mxu0 %v415
    %1835 = vmatpush1.msra.mxu0 %v414
    %1836 = vmatprep.subr.mxu0 %v413
    %1837 = vmatpush1.msra.mxu0 %v412
    %1838 = vmatprep.subr.mxu0 %v411
    %1839 = vmatpush1.msra.mxu0 %v410
    %1840 = vmatprep.subr.mxu0 %v409
    %1841 = vmatpush1.msra.mxu0 %v408
    %1842 = vmatprep.subr.mxu0 %v407
    %1843 = vmatpush1.msra.mxu0 %v406
    %1844 = vmatprep.subr.mxu0 %v405
    %1845 = vmatpush1.msra.mxu0 %v404
    %1846 = vmatprep.subr.mxu0 %v403
    %1847 = vmatpush1.msra.mxu0 %v402
    %1848 = vmatprep.subr.mxu0 %v401
    %1849 = vmatpush1.msra.mxu0 %v400
    %1850 = vmatprep.subr.mxu0 %v399
    %1851 = vmatpush1.msra.mxu0 %v398
    %1852 = vmatprep.subr.mxu0 %v397
    %1853 = vmatpush1.msra.mxu0 %v396
    %1854 = vmatprep.subr.mxu0 %v395
    %1855 = vmatpush1.msra.mxu0 %v394
    %1856 = vmatprep.subr.mxu0 %v393
    %1857 = vmatpush1.msra.mxu0 %v392
    %1858 = vmatprep.subr.mxu0 %v391
    %1859 = vmatpush1.msra.mxu0 %v390
    %1860 = vmatprep.subr.mxu0 %v453
    %1861 = vmatpush2.msra.mxu0 %v452
    %1862 = vmatprep.subr.mxu0 %v451
    %1863 = vmatpush2.msra.mxu0 %v450
    %1864 = vmatprep.subr.mxu0 %v449
    %1865 = vmatpush2.msra.mxu0 %v448
    %1866 = vmatprep.subr.mxu0 %v447
    %1867 = vmatpush2.msra.mxu0 %v446
    %1868 = vmatprep.subr.mxu0 %v445
    %1869 = vmatpush2.msra.mxu0 %v444
    %1870 = vmatprep.subr.mxu0 %v443
    %1871 = vmatpush2.msra.mxu0 %v442
    %1872 = vmatprep.subr.mxu0 %v441
    %1873 = vmatpush2.msra.mxu0 %v440
    %1874 = vmatprep.subr.mxu0 %v439
    %1875 = vmatpush2.msra.mxu0 %v438
    %1876 = vmatprep.subr.mxu0 %v437
    %1877 = vmatpush2.msra.mxu0 %v436
    %1878 = vmatprep.subr.mxu0 %v435
    %1879 = vmatpush2.msra.mxu0 %v434
    %1880 = vmatprep.subr.mxu0 %v433
    %1881 = vmatpush2.msra.mxu0 %v432
    %1882 = vmatprep.subr.mxu0 %v431
    %1883 = vmatpush2.msra.mxu0 %v430
    %1884 = vmatprep.subr.mxu0 %v429
    %1885 = vmatpush2.msra.mxu0 %v428
    %1886 = vmatprep.subr.mxu0 %v427
    %1887 = vmatpush2.msra.mxu0 %v426
    %1888 = vmatprep.subr.mxu0 %v425
    %1889 = vmatpush2.msra.mxu0 %v424
    %1890 = vmatprep.subr.mxu0 %v423
    %1891 = vmatpush2.msra.mxu0 %v422
    %1892 = vmatprep.mubr.f32.mxu0 %v1756
    %1893 = vmatmul.mubr.f32.gmra.mxu0 %v1755
    %v1894 = vpop.f32.mrf.mxu0
    %v1895 = vadd.f32 0.0, %v1894
    %v1896 = vpop.f32.mrf.mxu0
    %v1897 = vadd.f32 0.0, %v1896
    %1898 = vdwg.mxu0
    %1899 = vmatprep.subr.mxu0 %v225
    %1900 = vmatpush1.msra.mxu0 %v224
    %1901 = vmatprep.subr.mxu0 %v223
    %1902 = vmatpush1.msra.mxu0 %v222
    %1903 = vmatprep.subr.mxu0 %v221
    %1904 = vmatpush1.msra.mxu0 %v220
    %1905 = vmatprep.subr.mxu0 %v219
    %1906 = vmatpush1.msra.mxu0 %v218
    %1907 = vmatprep.subr.mxu0 %v217
    %1908 = vmatpush1.msra.mxu0 %v216
    %1909 = vmatprep.subr.mxu0 %v215
    %1910 = vmatpush1.msra.mxu0 %v214
    %1911 = vmatprep.subr.mxu0 %v213
    %1912 = vmatpush1.msra.mxu0 %v212
    %1913 = vmatprep.subr.mxu0 %v211
    %1914 = vmatpush1.msra.mxu0 %v210
    %1915 = vmatprep.subr.mxu0 %v209
    %1916 = vmatpush1.msra.mxu0 %v208
    %1917 = vmatprep.subr.mxu0 %v207
    %1918 = vmatpush1.msra.mxu0 %v206
    %1919 = vmatprep.subr.mxu0 %v205
    %1920 = vmatpush1.msra.mxu0 %v204
    %1921 = vmatprep.subr.mxu0 %v203
    %1922 = vmatpush1.msra.mxu0 %v202
    %1923 = vmatprep.subr.mxu0 %v201
    %1924 = vmatpush1.msra.mxu0 %v200
    %1925 = vmatprep.subr.mxu0 %v199
    %1926 = vmatpush1.msra.mxu0 %v198
    %1927 = vmatprep.subr.mxu0 %v197
    %1928 = vmatpush1.msra.mxu0 %v196
    %1929 = vmatprep.subr.mxu0 %v195
    %1930 = vmatpush1.msra.mxu0 %v194
    %1931 = vmatprep.subr.mxu0 %v257
    %1932 = vmatpush2.msra.mxu0 %v256
    %1933 = vmatprep.subr.mxu0 %v255
    %1934 = vmatpush2.msra.mxu0 %v254
    %1935 = vmatprep.subr.mxu0 %v253
    %1936 = vmatpush2.msra.mxu0 %v252
    %1937 = vmatprep.subr.mxu0 %v251
    %1938 = vmatpush2.msra.mxu0 %v250
    %1939 = vmatprep.subr.mxu0 %v249
    %1940 = vmatpush2.msra.mxu0 %v248
    %1941 = vmatprep.subr.mxu0 %v247
    %1942 = vmatpush2.msra.mxu0 %v246
    %1943 = vmatprep.subr.mxu0 %v245
    %1944 = vmatpush2.msra.mxu0 %v244
    %1945 = vmatprep.subr.mxu0 %v243
    %1946 = vmatpush2.msra.mxu0 %v242
    %1947 = vmatprep.subr.mxu0 %v241
    %1948 = vmatpush2.msra.mxu0 %v240
    %1949 = vmatprep.subr.mxu0 %v239
    %1950 = vmatpush2.msra.mxu0 %v238
    %1951 = vmatprep.subr.mxu0 %v237
    %1952 = vmatpush2.msra.mxu0 %v236
    %1953 = vmatprep.subr.mxu0 %v235
    %1954 = vmatpush2.msra.mxu0 %v234
    %1955 = vmatprep.subr.mxu0 %v233
    %1956 = vmatpush2.msra.mxu0 %v232
    %1957 = vmatprep.subr.mxu0 %v231
    %1958 = vmatpush2.msra.mxu0 %v230
    %1959 = vmatprep.subr.mxu0 %v229
    %1960 = vmatpush2.msra.mxu0 %v228
    %1961 = vmatprep.subr.mxu0 %v227
    %1962 = vmatpush2.msra.mxu0 %v226
    %1963 = vmatprep.mubr.f32.mxu0 %v1897
    %1964 = vmatmul.mubr.f32.gmra.mxu0 %v1895
    %v1965 = vpop.f32.mrf.mxu0
    %v1966 = vadd.f32 0.0, %v1965
    %v1967 = vpop.f32.mrf.mxu0
    %v1968 = vadd.f32 0.0, %v1967
    %1969 = vdwg.mxu0
    %1970 = vmatprep.subr.mxu0 0.0
    %1971 = vmatpush1.msra.mxu0 0.0
    %1972 = vmatprep.subr.mxu0 0.0
    %1973 = vmatpush1.msra.mxu0 0.0
    %1974 = vmatprep.subr.mxu0 0.0
    %1975 = vmatpush1.msra.mxu0 0.0
    %1976 = vmatprep.subr.mxu0 0.0
    %1977 = vmatpush1.msra.mxu0 0.0
    %1978 = vmatprep.subr.mxu0 0.0
    %1979 = vmatpush1.msra.mxu0 0.0
    %1980 = vmatprep.subr.mxu0 0.0
    %1981 = vmatpush1.msra.mxu0 0.0
    %1982 = vmatprep.subr.mxu0 0.0
    %1983 = vmatpush1.msra.mxu0 0.0
    %1984 = vmatprep.subr.mxu0 0.0
    %1985 = vmatpush1.msra.mxu0 0.0
    %1986 = vmatprep.subr.mxu0 0.0
    %1987 = vmatpush1.msra.mxu0 0.0
    %1988 = vmatprep.subr.mxu0 0.0
    %1989 = vmatpush1.msra.mxu0 0.0
    %1990 = vmatprep.subr.mxu0 0.0
    %1991 = vmatpush1.msra.mxu0 0.0
    %1992 = vmatprep.subr.mxu0 0.0
    %1993 = vmatpush1.msra.mxu0 0.0
    %1994 = vmatprep.subr.mxu0 0.0
    %1995 = vmatpush1.msra.mxu0 0.0
    %1996 = vmatprep.subr.mxu0 0.0
    %1997 = vmatpush1.msra.mxu0 0.0
    %1998 = vmatprep.subr.mxu0 0.0
    %1999 = vmatpush1.msra.mxu0 0.0
    %2000 = vmatprep.subr.mxu0 %v1826
    %2001 = vmatpush1.msra.mxu0 %v1824
    %2002 = vmatprep.subr.mxu0 0.0
    %2003 = vmatpush2.msra.mxu0 0.0
    %2004 = vmatprep.subr.mxu0 0.0
    %2005 = vmatpush2.msra.mxu0 0.0
    %2006 = vmatprep.subr.mxu0 0.0
    %2007 = vmatpush2.msra.mxu0 0.0
    %2008 = vmatprep.subr.mxu0 0.0
    %2009 = vmatpush2.msra.mxu0 0.0
    %2010 = vmatprep.subr.mxu0 0.0
    %2011 = vmatpush2.msra.mxu0 0.0
    %2012 = vmatprep.subr.mxu0 0.0
    %2013 = vmatpush2.msra.mxu0 0.0
    %2014 = vmatprep.subr.mxu0 0.0
    %2015 = vmatpush2.msra.mxu0 0.0
    %2016 = vmatprep.subr.mxu0 0.0
    %2017 = vmatpush2.msra.mxu0 0.0
    %2018 = vmatprep.subr.mxu0 0.0
    %2019 = vmatpush2.msra.mxu0 0.0
    %2020 = vmatprep.subr.mxu0 0.0
    %2021 = vmatpush2.msra.mxu0 0.0
    %2022 = vmatprep.subr.mxu0 0.0
    %2023 = vmatpush2.msra.mxu0 0.0
    %2024 = vmatprep.subr.mxu0 0.0
    %2025 = vmatpush2.msra.mxu0 0.0
    %2026 = vmatprep.subr.mxu0 0.0
    %2027 = vmatpush2.msra.mxu0 0.0
    %2028 = vmatprep.subr.mxu0 0.0
    %2029 = vmatpush2.msra.mxu0 0.0
    %2030 = vmatprep.subr.mxu0 0.0
    %2031 = vmatpush2.msra.mxu0 0.0
    %2032 = vmatprep.subr.mxu0 0.0
    %2033 = vmatpush2.msra.mxu0 0.0
    %2034 = vmatprep.mubr.f32.mxu0 0.0
    %2035 = vmatmul.mubr.f32.gmra.mxu0 %v929
    %v2036 = vpop.f32.mrf.mxu0
    %v2037 = vadd.f32 0.0, %v2036
    %v2038 = vpop.f32.mrf.mxu0
    %v2039 = vadd.f32 0.0, %v2038
    %2040 = vmatprep.mubr.f32.mxu0 0.0
    %2041 = vmatmul.mubr.f32.gmra.mxu0 %v932
    %v2042 = vpop.f32.mrf.mxu0
    %v2043 = vadd.f32 0.0, %v2042
    %v2044 = vpop.f32.mrf.mxu0
    %v2045 = vadd.f32 0.0, %v2044
    %2046 = vmatprep.mubr.f32.mxu0 0.0
    %2047 = vmatmul.mubr.f32.gmra.mxu0 %v935
    %v2048 = vpop.f32.mrf.mxu0
    %v2049 = vadd.f32 0.0, %v2048
    %v2050 = vpop.f32.mrf.mxu0
    %v2051 = vadd.f32 0.0, %v2050
    %2052 = vmatprep.mubr.f32.mxu0 0.0
    %2053 = vmatmul.mubr.f32.gmra.mxu0 %v938
    %v2054 = vpop.f32.mrf.mxu0
    %v2055 = vadd.f32 0.0, %v2054
    %v2056 = vpop.f32.mrf.mxu0
    %v2057 = vadd.f32 0.0, %v2056
    %2058 = vmatprep.mubr.f32.mxu0 0.0
    %2059 = vmatmul.mubr.f32.gmra.mxu0 %v941
    %v2060 = vpop.f32.mrf.mxu0
    %v2061 = vadd.f32 0.0, %v2060
    %v2062 = vpop.f32.mrf.mxu0
    %v2063 = vadd.f32 0.0, %v2062
    %2064 = vmatprep.mubr.f32.mxu0 0.0
    %2065 = vmatmul.mubr.f32.gmra.mxu0 %v944
    %v2066 = vpop.f32.mrf.mxu0
    %v2067 = vadd.f32 0.0, %v2066
    %v2068 = vpop.f32.mrf.mxu0
    %v2069 = vadd.f32 0.0, %v2068
    %2070 = vmatprep.mubr.f32.mxu0 0.0
    %2071 = vmatmul.mubr.f32.gmra.mxu0 %v947
    %v2072 = vpop.f32.mrf.mxu0
    %v2073 = vadd.f32 0.0, %v2072
    %v2074 = vpop.f32.mrf.mxu0
    %v2075 = vadd.f32 0.0, %v2074
    %2076 = vmatprep.mubr.f32.mxu0 0.0
    %2077 = vmatmul.mubr.f32.gmra.mxu0 %v950
    %v2078 = vpop.f32.mrf.mxu0
    %v2079 = vadd.f32 0.0, %v2078
    %v2080 = vpop.f32.mrf.mxu0
    %v2081 = vadd.f32 0.0, %v2080
    %2082 = vdwg.mxu0
    %2083 = vmatprep.subr.mxu0 0.0
    %2084 = vmatpush1.msra.mxu0 0.0
    %2085 = vmatprep.subr.mxu0 0.0
    %2086 = vmatpush1.msra.mxu0 0.0
    %2087 = vmatprep.subr.mxu0 0.0
    %2088 = vmatpush1.msra.mxu0 0.0
    %2089 = vmatprep.subr.mxu0 0.0
    %2090 = vmatpush1.msra.mxu0 0.0
    %2091 = vmatprep.subr.mxu0 0.0
    %2092 = vmatpush1.msra.mxu0 0.0
    %2093 = vmatprep.subr.mxu0 0.0
    %2094 = vmatpush1.msra.mxu0 0.0
    %2095 = vmatprep.subr.mxu0 0.0
    %2096 = vmatpush1.msra.mxu0 0.0
    %2097 = vmatprep.subr.mxu0 0.0
    %2098 = vmatpush1.msra.mxu0 0.0
    %2099 = vmatprep.subr.mxu0 0.0
    %2100 = vmatpush1.msra.mxu0 0.0
    %2101 = vmatprep.subr.mxu0 0.0
    %2102 = vmatpush1.msra.mxu0 0.0
    %2103 = vmatprep.subr.mxu0 0.0
    %2104 = vmatpush1.msra.mxu0 0.0
    %2105 = vmatprep.subr.mxu0 0.0
    %2106 = vmatpush1.msra.mxu0 0.0
    %2107 = vmatprep.subr.mxu0 0.0
    %2108 = vmatpush1.msra.mxu0 0.0
    %2109 = vmatprep.subr.mxu0 0.0
    %2110 = vmatpush1.msra.mxu0 0.0
    %2111 = vmatprep.subr.mxu0 0.0
    %2112 = vmatpush1.msra.mxu0 0.0
    %2113 = vmatprep.subr.mxu0 %v1756
    %2114 = vmatpush1.msra.mxu0 %v1755
    %2115 = vmatprep.subr.mxu0 0.0
    %2116 = vmatpush2.msra.mxu0 0.0
    %2117 = vmatprep.subr.mxu0 0.0
    %2118 = vmatpush2.msra.mxu0 0.0
    %2119 = vmatprep.subr.mxu0 0.0
    %2120 = vmatpush2.msra.mxu0 0.0
    %2121 = vmatprep.subr.mxu0 0.0
    %2122 = vmatpush2.msra.mxu0 0.0
    %2123 = vmatprep.subr.mxu0 0.0
    %2124 = vmatpush2.msra.mxu0 0.0
    %2125 = vmatprep.subr.mxu0 0.0
    %2126 = vmatpush2.msra.mxu0 0.0
    %2127 = vmatprep.subr.mxu0 0.0
    %2128 = vmatpush2.msra.mxu0 0.0
    %2129 = vmatprep.subr.mxu0 0.0
    %2130 = vmatpush2.msra.mxu0 0.0
    %2131 = vmatprep.subr.mxu0 0.0
    %2132 = vmatpush2.msra.mxu0 0.0
    %2133 = vmatprep.subr.mxu0 0.0
    %2134 = vmatpush2.msra.mxu0 0.0
    %2135 = vmatprep.subr.mxu0 0.0
    %2136 = vmatpush2.msra.mxu0 0.0
    %2137 = vmatprep.subr.mxu0 0.0
    %2138 = vmatpush2.msra.mxu0 0.0
    %2139 = vmatprep.subr.mxu0 0.0
    %2140 = vmatpush2.msra.mxu0 0.0
    %2141 = vmatprep.subr.mxu0 0.0
    %2142 = vmatpush2.msra.mxu0 0.0
    %2143 = vmatprep.subr.mxu0 0.0
    %2144 = vmatpush2.msra.mxu0 0.0
    %2145 = vmatprep.subr.mxu0 0.0
    %2146 = vmatpush2.msra.mxu0 0.0
    %2147 = vmatprep.mubr.f32.mxu0 0.0
    %2148 = vmatmul.mubr.f32.gmra.mxu0 %v1066
    %v2149 = vpop.f32.mrf.mxu0
    %v2150 = vadd.f32 %v2037, %v2149
    %v2151 = vpop.f32.mrf.mxu0
    %v2152 = vadd.f32 %v2039, %v2151
    %2153 = vmatprep.mubr.f32.mxu0 0.0
    %2154 = vmatmul.mubr.f32.gmra.mxu0 %v1069
    %v2155 = vpop.f32.mrf.mxu0
    %v2156 = vadd.f32 %v2043, %v2155
    %v2157 = vpop.f32.mrf.mxu0
    %v2158 = vadd.f32 %v2045, %v2157
    %2159 = vmatprep.mubr.f32.mxu0 0.0
    %2160 = vmatmul.mubr.f32.gmra.mxu0 %v1072
    %v2161 = vpop.f32.mrf.mxu0
    %v2162 = vadd.f32 %v2049, %v2161
    %v2163 = vpop.f32.mrf.mxu0
    %v2164 = vadd.f32 %v2051, %v2163
    %2165 = vmatprep.mubr.f32.mxu0 0.0
    %2166 = vmatmul.mubr.f32.gmra.mxu0 %v1075
    %v2167 = vpop.f32.mrf.mxu0
    %v2168 = vadd.f32 %v2055, %v2167
    %v2169 = vpop.f32.mrf.mxu0
    %v2170 = vadd.f32 %v2057, %v2169
    %2171 = vmatprep.mubr.f32.mxu0 0.0
    %2172 = vmatmul.mubr.f32.gmra.mxu0 %v1078
    %v2173 = vpop.f32.mrf.mxu0
    %v2174 = vadd.f32 %v2061, %v2173
    %v2175 = vpop.f32.mrf.mxu0
    %v2176 = vadd.f32 %v2063, %v2175
    %2177 = vmatprep.mubr.f32.mxu0 0.0
    %2178 = vmatmul.mubr.f32.gmra.mxu0 %v1081
    %v2179 = vpop.f32.mrf.mxu0
    %v2180 = vadd.f32 %v2067, %v2179
    %v2181 = vpop.f32.mrf.mxu0
    %v2182 = vadd.f32 %v2069, %v2181
    %2183 = vmatprep.mubr.f32.mxu0 0.0
    %2184 = vmatmul.mubr.f32.gmra.mxu0 %v1084
    %v2185 = vpop.f32.mrf.mxu0
    %v2186 = vadd.f32 %v2073, %v2185
    %v2187 = vpop.f32.mrf.mxu0
    %v2188 = vadd.f32 %v2075, %v2187
    %2189 = vmatprep.mubr.f32.mxu0 0.0
    %2190 = vmatmul.mubr.f32.gmra.mxu0 %v1087
    %v2191 = vpop.f32.mrf.mxu0
    %v2192 = vadd.f32 %v2079, %v2191
    %v2193 = vpop.f32.mrf.mxu0
    %v2194 = vadd.f32 %v2081, %v2193
    %2195 = vdwg.mxu0
    %2196 = vmatprep.subr.mxu0 0.0
    %2197 = vmatpush1.msra.mxu0 0.0
    %2198 = vmatprep.subr.mxu0 0.0
    %2199 = vmatpush1.msra.mxu0 0.0
    %2200 = vmatprep.subr.mxu0 0.0
    %2201 = vmatpush1.msra.mxu0 0.0
    %2202 = vmatprep.subr.mxu0 0.0
    %2203 = vmatpush1.msra.mxu0 0.0
    %2204 = vmatprep.subr.mxu0 0.0
    %2205 = vmatpush1.msra.mxu0 0.0
    %2206 = vmatprep.subr.mxu0 0.0
    %2207 = vmatpush1.msra.mxu0 0.0
    %2208 = vmatprep.subr.mxu0 0.0
    %2209 = vmatpush1.msra.mxu0 0.0
    %2210 = vmatprep.subr.mxu0 0.0
    %2211 = vmatpush1.msra.mxu0 0.0
    %2212 = vmatprep.subr.mxu0 0.0
    %2213 = vmatpush1.msra.mxu0 0.0
    %2214 = vmatprep.subr.mxu0 0.0
    %2215 = vmatpush1.msra.mxu0 0.0
    %2216 = vmatprep.subr.mxu0 0.0
    %2217 = vmatpush1.msra.mxu0 0.0
    %2218 = vmatprep.subr.mxu0 0.0
    %2219 = vmatpush1.msra.mxu0 0.0
    %2220 = vmatprep.subr.mxu0 0.0
    %2221 = vmatpush1.msra.mxu0 0.0
    %2222 = vmatprep.subr.mxu0 0.0
    %2223 = vmatpush1.msra.mxu0 0.0
    %2224 = vmatprep.subr.mxu0 0.0
    %2225 = vmatpush1.msra.mxu0 0.0
    %2226 = vmatprep.subr.mxu0 %v1897
    %2227 = vmatpush1.msra.mxu0 %v1895
    %2228 = vmatprep.subr.mxu0 0.0
    %2229 = vmatpush2.msra.mxu0 0.0
    %2230 = vmatprep.subr.mxu0 0.0
    %2231 = vmatpush2.msra.mxu0 0.0
    %2232 = vmatprep.subr.mxu0 0.0
    %2233 = vmatpush2.msra.mxu0 0.0
    %2234 = vmatprep.subr.mxu0 0.0
    %2235 = vmatpush2.msra.mxu0 0.0
    %2236 = vmatprep.subr.mxu0 0.0
    %2237 = vmatpush2.msra.mxu0 0.0
    %2238 = vmatprep.subr.mxu0 0.0
    %2239 = vmatpush2.msra.mxu0 0.0
    %2240 = vmatprep.subr.mxu0 0.0
    %2241 = vmatpush2.msra.mxu0 0.0
    %2242 = vmatprep.subr.mxu0 0.0
    %2243 = vmatpush2.msra.mxu0 0.0
    %2244 = vmatprep.subr.mxu0 0.0
    %2245 = vmatpush2.msra.mxu0 0.0
    %2246 = vmatprep.subr.mxu0 0.0
    %2247 = vmatpush2.msra.mxu0 0.0
    %2248 = vmatprep.subr.mxu0 0.0
    %2249 = vmatpush2.msra.mxu0 0.0
    %2250 = vmatprep.subr.mxu0 0.0
    %2251 = vmatpush2.msra.mxu0 0.0
    %2252 = vmatprep.subr.mxu0 0.0
    %2253 = vmatpush2.msra.mxu0 0.0
    %2254 = vmatprep.subr.mxu0 0.0
    %2255 = vmatpush2.msra.mxu0 0.0
    %2256 = vmatprep.subr.mxu0 0.0
    %2257 = vmatpush2.msra.mxu0 0.0
    %2258 = vmatprep.subr.mxu0 0.0
    %2259 = vmatpush2.msra.mxu0 0.0
    %2260 = vmatprep.mubr.f32.mxu0 0.0
    %2261 = vmatmul.mubr.f32.gmra.mxu0 %v1203
    %v2262 = vpop.f32.mrf.mxu0
    %v2263 = vadd.f32 0.0, %v2262
    %v2264 = vpop.f32.mrf.mxu0
    %v2265 = vadd.f32 0.0, %v2264
    %2266 = vmatprep.mubr.f32.mxu0 0.0
    %2267 = vmatmul.mubr.f32.gmra.mxu0 %v1206
    %v2268 = vpop.f32.mrf.mxu0
    %v2269 = vadd.f32 0.0, %v2268
    %v2270 = vpop.f32.mrf.mxu0
    %v2271 = vadd.f32 0.0, %v2270
    %2272 = vmatprep.mubr.f32.mxu0 0.0
    %2273 = vmatmul.mubr.f32.gmra.mxu0 %v1209
    %v2274 = vpop.f32.mrf.mxu0
    %v2275 = vadd.f32 0.0, %v2274
    %v2276 = vpop.f32.mrf.mxu0
    %v2277 = vadd.f32 0.0, %v2276
    %2278 = vmatprep.mubr.f32.mxu0 0.0
    %2279 = vmatmul.mubr.f32.gmra.mxu0 %v1212
    %v2280 = vpop.f32.mrf.mxu0
    %v2281 = vadd.f32 0.0, %v2280
    %v2282 = vpop.f32.mrf.mxu0
    %v2283 = vadd.f32 0.0, %v2282
    %2284 = vmatprep.mubr.f32.mxu0 0.0
    %2285 = vmatmul.mubr.f32.gmra.mxu0 %v1215
    %v2286 = vpop.f32.mrf.mxu0
    %v2287 = vadd.f32 0.0, %v2286
    %v2288 = vpop.f32.mrf.mxu0
    %v2289 = vadd.f32 0.0, %v2288
    %2290 = vmatprep.mubr.f32.mxu0 0.0
    %2291 = vmatmul.mubr.f32.gmra.mxu0 %v1218
    %v2292 = vpop.f32.mrf.mxu0
    %v2293 = vadd.f32 0.0, %v2292
    %v2294 = vpop.f32.mrf.mxu0
    %v2295 = vadd.f32 0.0, %v2294
    %2296 = vmatprep.mubr.f32.mxu0 0.0
    %2297 = vmatmul.mubr.f32.gmra.mxu0 %v1221
    %v2298 = vpop.f32.mrf.mxu0
    %v2299 = vadd.f32 0.0, %v2298
    %v2300 = vpop.f32.mrf.mxu0
    %v2301 = vadd.f32 0.0, %v2300
    %2302 = vmatprep.mubr.f32.mxu0 0.0
    %2303 = vmatmul.mubr.f32.gmra.mxu0 %v1224
    %v2304 = vpop.f32.mrf.mxu0
    %v2305 = vadd.f32 0.0, %v2304
    %v2306 = vpop.f32.mrf.mxu0
    %v2307 = vadd.f32 0.0, %v2306
    %2308 = vdwg.mxu0
    %v2309 = vadd.f32 %v2150, %v2263
    %v2310 = vadd.f32 %v2152, %v2265
    %v2311 = vadd.f32 %v2156, %v2269
    %v2312 = vadd.f32 %v2158, %v2271
    %v2313 = vadd.f32 %v2162, %v2275
    %v2314 = vadd.f32 %v2164, %v2277
    %v2315 = vadd.f32 %v2168, %v2281
    %v2316 = vadd.f32 %v2170, %v2283
    %v2317 = vadd.f32 %v2174, %v2287
    %v2318 = vadd.f32 %v2176, %v2289
    %v2319 = vadd.f32 %v2180, %v2293
    %v2320 = vadd.f32 %v2182, %v2295
    %v2321 = vadd.f32 %v2186, %v2299
    %v2322 = vadd.f32 %v2188, %v2301
    %v2323 = vadd.f32 %v2192, %v2305
    %v2324 = vadd.f32 %v2194, %v2307
    %2325 = vmatprep.subr.mxu0 0.0
    %2326 = vmatpush1.msra.mxu0 0.0
    %2327 = vmatprep.subr.mxu0 0.0
    %2328 = vmatpush1.msra.mxu0 0.0
    %2329 = vmatprep.subr.mxu0 0.0
    %2330 = vmatpush1.msra.mxu0 0.0
    %2331 = vmatprep.subr.mxu0 0.0
    %2332 = vmatpush1.msra.mxu0 0.0
    %2333 = vmatprep.subr.mxu0 0.0
    %2334 = vmatpush1.msra.mxu0 0.0
    %2335 = vmatprep.subr.mxu0 0.0
    %2336 = vmatpush1.msra.mxu0 0.0
    %2337 = vmatprep.subr.mxu0 0.0
    %2338 = vmatpush1.msra.mxu0 0.0
    %2339 = vmatprep.subr.mxu0 0.0
    %2340 = vmatpush1.msra.mxu0 0.0
    %2341 = vmatprep.subr.mxu0 0.0
    %2342 = vmatpush1.msra.mxu0 0.0
    %2343 = vmatprep.subr.mxu0 0.0
    %2344 = vmatpush1.msra.mxu0 0.0
    %2345 = vmatprep.subr.mxu0 0.0
    %2346 = vmatpush1.msra.mxu0 0.0
    %2347 = vmatprep.subr.mxu0 0.0
    %2348 = vmatpush1.msra.mxu0 0.0
    %2349 = vmatprep.subr.mxu0 0.0
    %2350 = vmatpush1.msra.mxu0 0.0
    %2351 = vmatprep.subr.mxu0 0.0
    %2352 = vmatpush1.msra.mxu0 0.0
    %2353 = vmatprep.subr.mxu0 0.0
    %2354 = vmatpush1.msra.mxu0 0.0
    %2355 = vmatprep.subr.mxu0 %v1968
    %2356 = vmatpush1.msra.mxu0 %v1966
    %2357 = vmatprep.subr.mxu0 0.0
    %2358 = vmatpush2.msra.mxu0 0.0
    %2359 = vmatprep.subr.mxu0 0.0
    %2360 = vmatpush2.msra.mxu0 0.0
    %2361 = vmatprep.subr.mxu0 0.0
    %2362 = vmatpush2.msra.mxu0 0.0
    %2363 = vmatprep.subr.mxu0 0.0
    %2364 = vmatpush2.msra.mxu0 0.0
    %2365 = vmatprep.subr.mxu0 0.0
    %2366 = vmatpush2.msra.mxu0 0.0
    %2367 = vmatprep.subr.mxu0 0.0
    %2368 = vmatpush2.msra.mxu0 0.0
    %2369 = vmatprep.subr.mxu0 0.0
    %2370 = vmatpush2.msra.mxu0 0.0
    %2371 = vmatprep.subr.mxu0 0.0
    %2372 = vmatpush2.msra.mxu0 0.0
    %2373 = vmatprep.subr.mxu0 0.0
    %2374 = vmatpush2.msra.mxu0 0.0
    %2375 = vmatprep.subr.mxu0 0.0
    %2376 = vmatpush2.msra.mxu0 0.0
    %2377 = vmatprep.subr.mxu0 0.0
    %2378 = vmatpush2.msra.mxu0 0.0
    %2379 = vmatprep.subr.mxu0 0.0
    %2380 = vmatpush2.msra.mxu0 0.0
    %2381 = vmatprep.subr.mxu0 0.0
    %2382 = vmatpush2.msra.mxu0 0.0
    %2383 = vmatprep.subr.mxu0 0.0
    %2384 = vmatpush2.msra.mxu0 0.0
    %2385 = vmatprep.subr.mxu0 0.0
    %2386 = vmatpush2.msra.mxu0 0.0
    %2387 = vmatprep.subr.mxu0 0.0
    %2388 = vmatpush2.msra.mxu0 0.0
    %2389 = vmatprep.mubr.f32.mxu0 0.0
    %2390 = vmatmul.mubr.f32.gmra.mxu0 %v1356
    %v2391 = vpop.f32.mrf.mxu0
    %v2392 = vadd.f32 0.0, %v2391
    %v2393 = vpop.f32.mrf.mxu0
    %v2394 = vadd.f32 0.0, %v2393
    %2395 = vmatprep.mubr.f32.mxu0 0.0
    %2396 = vmatmul.mubr.f32.gmra.mxu0 %v1359
    %v2397 = vpop.f32.mrf.mxu0
    %v2398 = vadd.f32 0.0, %v2397
    %v2399 = vpop.f32.mrf.mxu0
    %v2400 = vadd.f32 0.0, %v2399
    %2401 = vmatprep.mubr.f32.mxu0 0.0
    %2402 = vmatmul.mubr.f32.gmra.mxu0 %v1362
    %v2403 = vpop.f32.mrf.mxu0
    %v2404 = vadd.f32 0.0, %v2403
    %v2405 = vpop.f32.mrf.mxu0
    %v2406 = vadd.f32 0.0, %v2405
    %2407 = vmatprep.mubr.f32.mxu0 0.0
    %2408 = vmatmul.mubr.f32.gmra.mxu0 %v1365
    %v2409 = vpop.f32.mrf.mxu0
    %v2410 = vadd.f32 0.0, %v2409
    %v2411 = vpop.f32.mrf.mxu0
    %v2412 = vadd.f32 0.0, %v2411
    %2413 = vmatprep.mubr.f32.mxu0 0.0
    %2414 = vmatmul.mubr.f32.gmra.mxu0 %v1368
    %v2415 = vpop.f32.mrf.mxu0
    %v2416 = vadd.f32 0.0, %v2415
    %v2417 = vpop.f32.mrf.mxu0
    %v2418 = vadd.f32 0.0, %v2417
    %2419 = vmatprep.mubr.f32.mxu0 0.0
    %2420 = vmatmul.mubr.f32.gmra.mxu0 %v1371
    %v2421 = vpop.f32.mrf.mxu0
    %v2422 = vadd.f32 0.0, %v2421
    %v2423 = vpop.f32.mrf.mxu0
    %v2424 = vadd.f32 0.0, %v2423
    %2425 = vmatprep.mubr.f32.mxu0 0.0
    %2426 = vmatmul.mubr.f32.gmra.mxu0 %v1374
    %v2427 = vpop.f32.mrf.mxu0
    %v2428 = vadd.f32 0.0, %v2427
    %v2429 = vpop.f32.mrf.mxu0
    %v2430 = vadd.f32 0.0, %v2429
    %2431 = vmatprep.mubr.f32.mxu0 0.0
    %2432 = vmatmul.mubr.f32.gmra.mxu0 %v1377
    %v2433 = vpop.f32.mrf.mxu0
    %v2434 = vadd.f32 0.0, %v2433
    %v2435 = vpop.f32.mrf.mxu0
    %v2436 = vadd.f32 0.0, %v2435
    %2437 = vdwg.mxu0
    %v2438 = vadd.f32 %v2309, %v2392
    %v2439 = vadd.f32 %v2310, %v2394
    %v2440 = vadd.f32 %v2311, %v2398
    %v2441 = vadd.f32 %v2312, %v2400
    %v2442 = vadd.f32 %v2313, %v2404
    %v2443 = vadd.f32 %v2314, %v2406
    %v2444 = vadd.f32 %v2315, %v2410
    %v2445 = vadd.f32 %v2316, %v2412
    %v2446 = vadd.f32 %v2317, %v2416
    %v2447 = vadd.f32 %v2318, %v2418
    %v2448 = vadd.f32 %v2319, %v2422
    %v2449 = vadd.f32 %v2320, %v2424
    %v2450 = vadd.f32 %v2321, %v2428
    %v2451 = vadd.f32 %v2322, %v2430
    %v2452 = vadd.f32 %v2323, %v2434
    %v2453 = vadd.f32 %v2324, %v2436
    %v2454 = vmin.f32 %v2438, %v2440
    %v2455 = vrot.slane %v2454, 4
    %v2456 = vmin.f32 %v2454, %v2455
    %v2457 = vrot.slane %v2456, 2
    %v2458 = vmin.f32 %v2456, %v2457
    %v2459 = vrot.slane %v2458, 1
    %v2460 = vmin.f32 %v2458, %v2459
    %v2461 = vmin.f32 %v2439, %v2441
    %v2462 = vrot.slane %v2461, 4
    %v2463 = vmin.f32 %v2461, %v2462
    %v2464 = vrot.slane %v2463, 2
    %v2465 = vmin.f32 %v2463, %v2464
    %v2466 = vrot.slane %v2465, 1
    %v2467 = vmin.f32 %v2465, %v2466
    %v2468 = vmin.f32 %v2442, %v2444
    %v2469 = vrot.slane %v2468, 4
    %v2470 = vmin.f32 %v2468, %v2469
    %v2471 = vrot.slane %v2470, 2
    %v2472 = vmin.f32 %v2470, %v2471
    %v2473 = vrot.slane %v2472, 1
    %v2474 = vmin.f32 %v2472, %v2473
    %v2475 = vmin.f32 %v2443, %v2445
    %v2476 = vrot.slane %v2475, 4
    %v2477 = vmin.f32 %v2475, %v2476
    %v2478 = vrot.slane %v2477, 2
    %v2479 = vmin.f32 %v2477, %v2478
    %v2480 = vrot.slane %v2479, 1
    %v2481 = vmin.f32 %v2479, %v2480
    %v2482 = vmin.f32 %v2446, %v2448
    %v2483 = vrot.slane %v2482, 4
    %v2484 = vmin.f32 %v2482, %v2483
    %v2485 = vrot.slane %v2484, 2
    %v2486 = vmin.f32 %v2484, %v2485
    %v2487 = vrot.slane %v2486, 1
    %v2488 = vmin.f32 %v2486, %v2487
    %v2489 = vmin.f32 %v2447, %v2449
    %v2490 = vrot.slane %v2489, 4
    %v2491 = vmin.f32 %v2489, %v2490
    %v2492 = vrot.slane %v2491, 2
    %v2493 = vmin.f32 %v2491, %v2492
    %v2494 = vrot.slane %v2493, 1
    %v2495 = vmin.f32 %v2493, %v2494
    %v2496 = vmin.f32 %v2450, %v2452
    %v2497 = vrot.slane %v2496, 4
    %v2498 = vmin.f32 %v2496, %v2497
    %v2499 = vrot.slane %v2498, 2
    %v2500 = vmin.f32 %v2498, %v2499
    %v2501 = vrot.slane %v2500, 1
    %v2502 = vmin.f32 %v2500, %v2501
    %v2503 = vmin.f32 %v2451, %v2453
    %v2504 = vrot.slane %v2503, 4
    %v2505 = vmin.f32 %v2503, %v2504
    %v2506 = vrot.slane %v2505, 2
    %v2507 = vmin.f32 %v2505, %v2506
    %v2508 = vrot.slane %v2507, 1
    %v2509 = vmin.f32 %v2507, %v2508
    %v2510 = vadd.f32 %v2460, %v2488
    %v2511 = vadd.f32 %v2467, %v2495
    %v2512 = vadd.f32 %v2474, %v2502
    %v2513 = vadd.f32 %v2481, %v2509
    %2514 = vmatprep.subr.mxu0 0.0
    %2515 = vmatpush1.msra.mxu0 %v661
    %2516 = vmatprep.subr.mxu0 0.0
    %2517 = vmatpush1.msra.mxu0 %v660
    %2518 = vmatprep.subr.mxu0 0.0
    %2519 = vmatpush1.msra.mxu0 %v659
    %2520 = vmatprep.subr.mxu0 0.0
    %2521 = vmatpush1.msra.mxu0 %v658
    %2522 = vmatprep.subr.mxu0 0.0
    %2523 = vmatpush1.msra.mxu0 %v657
    %2524 = vmatprep.subr.mxu0 0.0
    %2525 = vmatpush1.msra.mxu0 %v656
    %2526 = vmatprep.subr.mxu0 0.0
    %2527 = vmatpush1.msra.mxu0 %v655
    %2528 = vmatprep.subr.mxu0 0.0
    %2529 = vmatpush1.msra.mxu0 %v654
    %2530 = vmatprep.subr.mxu0 0.0
    %2531 = vmatpush1.msra.mxu0 %v653
    %2532 = vmatprep.subr.mxu0 0.0
    %2533 = vmatpush1.msra.mxu0 %v652
    %2534 = vmatprep.subr.mxu0 0.0
    %2535 = vmatpush1.msra.mxu0 %v651
    %2536 = vmatprep.subr.mxu0 0.0
    %2537 = vmatpush1.msra.mxu0 %v650
    %2538 = vmatprep.subr.mxu0 0.0
    %2539 = vmatpush1.msra.mxu0 %v649
    %2540 = vmatprep.subr.mxu0 0.0
    %2541 = vmatpush1.msra.mxu0 %v648
    %2542 = vmatprep.subr.mxu0 0.0
    %2543 = vmatpush1.msra.mxu0 %v647
    %2544 = vmatprep.subr.mxu0 0.0
    %2545 = vmatpush1.msra.mxu0 %v646
    %2546 = vmatprep.subr.mxu0 0.0
    %2547 = vmatpush2.msra.mxu0 %v677
    %2548 = vmatprep.subr.mxu0 0.0
    %2549 = vmatpush2.msra.mxu0 %v676
    %2550 = vmatprep.subr.mxu0 0.0
    %2551 = vmatpush2.msra.mxu0 %v675
    %2552 = vmatprep.subr.mxu0 0.0
    %2553 = vmatpush2.msra.mxu0 %v674
    %2554 = vmatprep.subr.mxu0 0.0
    %2555 = vmatpush2.msra.mxu0 %v673
    %2556 = vmatprep.subr.mxu0 0.0
    %2557 = vmatpush2.msra.mxu0 %v672
    %2558 = vmatprep.subr.mxu0 0.0
    %2559 = vmatpush2.msra.mxu0 %v671
    %2560 = vmatprep.subr.mxu0 0.0
    %2561 = vmatpush2.msra.mxu0 %v670
    %2562 = vmatprep.subr.mxu0 0.0
    %2563 = vmatpush2.msra.mxu0 %v669
    %2564 = vmatprep.subr.mxu0 0.0
    %2565 = vmatpush2.msra.mxu0 %v668
    %2566 = vmatprep.subr.mxu0 0.0
    %2567 = vmatpush2.msra.mxu0 %v667
    %2568 = vmatprep.subr.mxu0 0.0
    %2569 = vmatpush2.msra.mxu0 %v666
    %2570 = vmatprep.subr.mxu0 0.0
    %2571 = vmatpush2.msra.mxu0 %v665
    %2572 = vmatprep.subr.mxu0 0.0
    %2573 = vmatpush2.msra.mxu0 %v664
    %2574 = vmatprep.subr.mxu0 0.0
    %2575 = vmatpush2.msra.mxu0 %v663
    %2576 = vmatprep.subr.mxu0 0.0
    %2577 = vmatpush2.msra.mxu0 %v662
    %2578 = vmatprep.mubr.f32.mxu0 %v2513
    %2579 = vmatmul.mubr.f32.gmra.mxu0 %v2512
    %v2580 = vpop.f32.mrf.mxu0
    %v2581 = vadd.f32 0.0, %v2580
    %v2582 = vpop.f32.mrf.mxu0
    %2583 = vdwg.mxu0
    %2584 = vmatprep.subr.mxu0 0.0
    %2585 = vmatpush1.msra.mxu0 %v565
    %2586 = vmatprep.subr.mxu0 0.0
    %2587 = vmatpush1.msra.mxu0 %v564
    %2588 = vmatprep.subr.mxu0 0.0
    %2589 = vmatpush1.msra.mxu0 %v563
    %2590 = vmatprep.subr.mxu0 0.0
    %2591 = vmatpush1.msra.mxu0 %v562
    %2592 = vmatprep.subr.mxu0 0.0
    %2593 = vmatpush1.msra.mxu0 %v561
    %2594 = vmatprep.subr.mxu0 0.0
    %2595 = vmatpush1.msra.mxu0 %v560
    %2596 = vmatprep.subr.mxu0 0.0
    %2597 = vmatpush1.msra.mxu0 %v559
    %2598 = vmatprep.subr.mxu0 0.0
    %2599 = vmatpush1.msra.mxu0 %v558
    %2600 = vmatprep.subr.mxu0 0.0
    %2601 = vmatpush1.msra.mxu0 %v557
    %2602 = vmatprep.subr.mxu0 0.0
    %2603 = vmatpush1.msra.mxu0 %v556
    %2604 = vmatprep.subr.mxu0 0.0
    %2605 = vmatpush1.msra.mxu0 %v555
    %2606 = vmatprep.subr.mxu0 0.0
    %2607 = vmatpush1.msra.mxu0 %v554
    %2608 = vmatprep.subr.mxu0 0.0
    %2609 = vmatpush1.msra.mxu0 %v553
    %2610 = vmatprep.subr.mxu0 0.0
    %2611 = vmatpush1.msra.mxu0 %v552
    %2612 = vmatprep.subr.mxu0 0.0
    %2613 = vmatpush1.msra.mxu0 %v551
    %2614 = vmatprep.subr.mxu0 0.0
    %2615 = vmatpush1.msra.mxu0 %v550
    %2616 = vmatprep.subr.mxu0 0.0
    %2617 = vmatpush2.msra.mxu0 %v581
    %2618 = vmatprep.subr.mxu0 0.0
    %2619 = vmatpush2.msra.mxu0 %v580
    %2620 = vmatprep.subr.mxu0 0.0
    %2621 = vmatpush2.msra.mxu0 %v579
    %2622 = vmatprep.subr.mxu0 0.0
    %2623 = vmatpush2.msra.mxu0 %v578
    %2624 = vmatprep.subr.mxu0 0.0
    %2625 = vmatpush2.msra.mxu0 %v577
    %2626 = vmatprep.subr.mxu0 0.0
    %2627 = vmatpush2.msra.mxu0 %v576
    %2628 = vmatprep.subr.mxu0 0.0
    %2629 = vmatpush2.msra.mxu0 %v575
    %2630 = vmatprep.subr.mxu0 0.0
    %2631 = vmatpush2.msra.mxu0 %v574
    %2632 = vmatprep.subr.mxu0 0.0
    %2633 = vmatpush2.msra.mxu0 %v573
    %2634 = vmatprep.subr.mxu0 0.0
    %2635 = vmatpush2.msra.mxu0 %v572
    %2636 = vmatprep.subr.mxu0 0.0
    %2637 = vmatpush2.msra.mxu0 %v571
    %2638 = vmatprep.subr.mxu0 0.0
    %2639 = vmatpush2.msra.mxu0 %v570
    %2640 = vmatprep.subr.mxu0 0.0
    %2641 = vmatpush2.msra.mxu0 %v569
    %2642 = vmatprep.subr.mxu0 0.0
    %2643 = vmatpush2.msra.mxu0 %v568
    %2644 = vmatprep.subr.mxu0 0.0
    %2645 = vmatpush2.msra.mxu0 %v567
    %2646 = vmatprep.subr.mxu0 0.0
    %2647 = vmatpush2.msra.mxu0 %v566
    %2648 = vmatprep.mubr.f32.mxu0 %v2511
    %2649 = vmatmul.mubr.f32.gmra.mxu0 %v2510
    %v2650 = vpop.f32.mrf.mxu0
    %v2651 = vadd.f32 %v2581, %v2650
    %v2652 = vpop.f32.mrf.mxu0
    %2653 = vdwg.mxu0
    %v2654 = vmul.f32 %v2651, 0.70710677
    %v2655 = vand.u32 2147483647, %v2654
    %v2656 = vmul.f32 %v2655, 0.3275911
    %v2657 = vadd.f32 %v2656, 1.0
    %v2658 = vrcp.pop %v2657
    %v2659 = vmul.f32 1.0, %v2658
    %v2660 = vmul.f32 %v2659, 1.0614054
    %v2661 = vadd.f32 %v2660, -1.4531521
    %v2662 = vmul.f32 %v2659, %v2661
    %v2663 = vadd.f32 %v2662, 1.4214138
    %v2664 = vmul.f32 %v2659, %v2663
    %v2665 = vadd.f32 %v2664, -0.28449672
    %v2666 = vmul.f32 %v2659, %v2665
    %v2667 = vadd.f32 %v2666, 0.2548296
    %v2668 = vmul.f32 %v2659, %v2667
    %v2669 = vsub.f32 0.0, %v2655
    %v2670 = vmul.f32 %v2669, %v2655
    %v2671 = vmul.f32 %v2670, 1.442695
    %v2672 = vpow.pop %v2671
    %v2673 = vmul.f32 %v2668, %v2672
    %v2674 = vsub.f32 1.0, %v2673
    %vm2675 = vcmp.ge.f32.partialorder %v2654, 0.0
    %v2676 = vsub.f32 0.0, %v2674
    %v2677 = vsel %vm2675, %v2674, %v2676
    %v2678 = vmul.f32 %v2651, 0.5
    %v2679 = vadd.f32 %v2677, 1.0
    %v2680 = vmul.f32 %v2678, %v2679
    %v2681 = vlaneseq
    %v2682 = vshrl.u32 %v2681, 7
    %v2683 = vsub.s32 0, %v2682
    %v2684 = vrot.slane %v2680, %v2683
    %v2685 = vadd.f32 %v1738, %v2684
    %v2686 = vadd.f32 %v1743, %v2684
    %s2687 = scalar_lea.vmem [#allocation2], 16
    %2688 = vst.msk [vmem:[%s2687] sm:$0xff] %vm1751, %v2685
    %2689 = vst.msk [vmem:[%s2687 + $0x8] sm:$0xff] %vm1751, %v2686
    // Predicated region
    $region26: #{model_forward.1} parent=1 // pred_check
      _
    $region27: #{model_forward.1} parent=1 // pred_check_branch
      %2691 = sbr.rel (0) target = $region29
    $region28: #{model_forward.1} parent=1 // pred_region
      %s2693 = ssub.s32 512, 512
      %2694 = vsyncadd [#allocation3], %s2693
      %s2695 = sshll.u32 [#allocation2], 4
      %s2696 = int_to_ptr.vmem [resolvable:$true] %s2695
      %2701 = dma.vmem_to_hbm [thread:$0]  %s2696, 512, %s6, [#allocation3], 128, 128, 8
    $region29: #{model_forward.1} parent=1 // pred_fallthru
      _
    // Predicated region
    $region30: #{model_forward.1} parent=1 // pred_check
      _
    $region31: #{model_forward.1} parent=1 // pred_check_branch
      %2703 = sbr.rel (0) target = $region33
    $region32: #{model_forward.1} parent=1 // pred_region
      %2704 = dma.done [#allocation3], 512
    $region33: #{model_forward.1} parent=1 // pred_fallthru
      _
    %2705 = vsyncpa [#allocation3], 1

</llo_original>
